<compile_context>
chip_gen: v7x
topology: tpu7x:2x2x1
jax: 0.10.0
libtpu: 0.0.40
codegen_flags: <defaults>
</compile_context>

<pallas_src>
import functools

import jax
import jax.numpy as jnp
from jax.experimental import pallas as pl
from jax.experimental.pallas import tpu as pltpu

D_IN, H1, H2, D_OUT = 1836, 150, 150, 159

# Lane-dense padded sizes (multiples of 256 saturate v6e/v7x MXU tiles; also
# 128-multiples, which is all v5e needs).
H_PAD = 256
OUT_PAD = 256


def _round_up(v, m):
    return (v + m - 1) // m * m


def _pad_to(a, shape):
    pads = [(0, t - s) for s, t in zip(a.shape, shape)]
    return jnp.pad(a, pads)


def infnet_kernel(x_ref, w1_ref, b1_ref, w2_ref, b2_ref, w3_ref,
                  sig_ref, out_ref):
    # x arrives f32 straight from HBM (no wrapper-side bf16 rewrite); the
    # f32->bf16 cast is cheap VPU work hidden under the x DMA.
    x = x_ref[...].astype(jnp.bfloat16)                          # (TB, D_IN)

    # layer1 + ReLU (bf16 operands, f32 accumulation on the MXU)
    h = jnp.dot(x, w1_ref[...], preferred_element_type=jnp.float32) + b1_ref[...]
    h = jnp.maximum(h, 0.0).astype(jnp.bfloat16)

    # layer2 + ReLU
    h = jnp.dot(h, w2_ref[...], preferred_element_type=jnp.float32) + b2_ref[...]
    h = jnp.maximum(h, 0.0).astype(jnp.bfloat16)

    # layer3 (no bias)
    o = jnp.dot(h, w3_ref[...], preferred_element_type=jnp.float32)

    # bf16 stores: halves writeback bytes on a mem-bound kernel.
    out_ref[...] = o.astype(out_ref.dtype)
    # sigmoid via tanh: single EUP transcendental + one FMA, result in [0, 1].
    # (Padded output lanes evaluate to sigmoid(0)=0.5 and are sliced off.)
    sig_ref[...] = (0.5 * jnp.tanh(0.5 * o) + 0.5).astype(sig_ref.dtype)


def pack_params(params):
    """Zero-pad hidden/output dims to lane-dense sizes; cast weights to bf16.

    Zero padding is exact: padded hidden columns are relu(0 + 0) = 0, and the
    corresponding padded weight rows of the next layer are 0, so the logical
    150/159-wide result is unchanged.
    """
    w1, b1, w2, b2, w3 = params
    w1p = _pad_to(w1, (D_IN, H_PAD)).astype(jnp.bfloat16)
    b1p = _pad_to(b1.reshape(1, -1), (1, H_PAD)).astype(jnp.float32)
    w2p = _pad_to(w2, (H_PAD, H_PAD)).astype(jnp.bfloat16)
    b2p = _pad_to(b2.reshape(1, -1), (1, H_PAD)).astype(jnp.float32)
    w3p = _pad_to(w3, (H_PAD, OUT_PAD)).astype(jnp.bfloat16)
    # TODO(synk): fp8 weights (f32 acc) are a v7x-only, small-batch win; bf16 is
    # the portable choice across v5e/v6e/v7x.
    return (w1p, b1p, w2p, b2p, w3p)


def _choose_batch_tile(B, block_b):
    """Pick a batch tile (multiple of 8) and grid size.

    >=256 rows/tile amortizes the ~0.35us/step pipeline overhead; ~8 tiles at
    large batch keeps the x DMA double-buffered and splits evenly across v7x's
    two TensorCores (neutral on single-TC v5e/v6e).  Best-effort even tile
    count; never exceeds the 8-aligned batch, so no full-array padding is ever
    needed.
    """
    block_b = max(8, _round_up(block_b, 8))
    b8 = _round_up(B, 8)
    tb = min(block_b, max(256, _round_up(pl.cdiv(b8, 8), 8)), b8)
    n_tiles = pl.cdiv(B, tb)
    if n_tiles > 1 and n_tiles % 2 == 1:
        tb2 = max(8, _round_up(pl.cdiv(b8, n_tiles + 1), 8))
        if pl.cdiv(B, tb2) % 2 == 0:
            tb, n_tiles = tb2, pl.cdiv(B, tb2)
    return tb, n_tiles


@functools.partial(jax.jit, static_argnames=("block_b",))
def infnet_forward(x, packed_params, block_b=1024):
    """Returns (sigmoid(out), out), each (B, 159) float32."""
    w1p, b1p, w2p, b2p, w3p = packed_params
    B = x.shape[0]
    tb, n_tiles = _choose_batch_tile(B, block_b)

    const = lambda shape: pl.BlockSpec(shape, lambda i: (0,) * len(shape))
    tiled = lambda shape: pl.BlockSpec(shape, lambda i: (i, 0))
    # TODO(synk): pipeline_mode=pl.Buffered(1) on the constant weight specs
    # would save ~1.2 MiB of double-buffer VMEM; left off for lowering safety.

    flops = 2 * B * (D_IN * H_PAD + H_PAD * H_PAD + H_PAD * OUT_PAD)
    bytes_accessed = (
        B * D_IN * 4                                     # f32 x read once
        + (w1p.size + w2p.size + w3p.size) * 2           # bf16 weights
        + (b1p.size + b2p.size) * 4                      # f32 biases
        + 2 * B * OUT_PAD * 2                            # two bf16 outputs
    )
    cost = pl.CostEstimate(flops=flops,
                           transcendentals=B * OUT_PAD,
                           bytes_accessed=bytes_accessed)

    sig, out = pl.pallas_call(
        infnet_kernel,
        grid=(n_tiles,),
        in_specs=[
            tiled((tb, D_IN)),       # x: f32, batch-tiled, double-buffered
            const((D_IN, H_PAD)),    # weights/biases resident across batch tiles
            const((1, H_PAD)),
            const((H_PAD, H_PAD)),
            const((1, H_PAD)),
            const((H_PAD, OUT_PAD)),
        ],
        out_specs=[
            tiled((tb, OUT_PAD)),    # sigmoid(out), bf16, lane-dense (256 wide)
            tiled((tb, OUT_PAD)),    # out (pre-sigmoid), bf16
        ],
        out_shape=[
            jax.ShapeDtypeStruct((B, OUT_PAD), jnp.bfloat16),
            jax.ShapeDtypeStruct((B, OUT_PAD), jnp.bfloat16),
        ],
        compiler_params=pltpu.CompilerParams(
            dimension_semantics=("parallel",),   # megacore / v7x 2-TC sharding
            vmem_limit_bytes=48 << 20,           # headroom under v7x's 64 MiB
        ),
        cost_estimate=cost,
    )(x.astype(jnp.float32), w1p, b1p, w2p, b2p, w3p)

    # Slice padded output lanes back to the logical width and cast to the f32
    # API dtype (tiny (B,159) arrays; the big HBM writes stayed bf16).
    return (sig[:, :D_OUT].astype(jnp.float32),
            out[:, :D_OUT].astype(jnp.float32))


def init_params(key):
    """Deterministic init mimicking PyTorch nn.Linear default U(-1/sqrt(fan_in), +)."""
    k1, k2, k3, k4, k5 = jax.random.split(key, 5)

    def uniform(k, shape, fan_in):
        bound = 1.0 / jnp.sqrt(jnp.float32(fan_in))
        return jax.random.uniform(k, shape, jnp.float32, -bound, bound)

    w1 = uniform(k1, (D_IN, H1), D_IN)
    b1 = uniform(k2, (H1,), D_IN)
    w2 = uniform(k3, (H1, H2), H1)
    b2 = uniform(k4, (H2,), H1)
    w3 = uniform(k5, (H2, D_OUT), H2)   # layer3 has bias=False
    return (w1, b1, w2, b2, w3)


def reference_forward(x, params):
    """Pure-JAX f32 reference matching the PyTorch forward."""
    w1, b1, w2, b2, w3 = params
    h = jax.nn.relu(x @ w1 + b1)
    h = jax.nn.relu(h @ w2 + b2)
    o = h @ w3
    return jax.nn.sigmoid(o), o


if __name__ == "__main__":
    key = jax.random.PRNGKey(0)
    kp, kx = jax.random.split(key)

    params = init_params(kp)
    packed = pack_params(params)

    # B=8: tiny aligned single-tile path.  B=600: multi-tile grid with a ragged
    # final block (no wrapper-side batch padding) and even tile count.
    for B in (8, 600):
        x = jax.random.normal(jax.random.fold_in(kx, B), (B, D_IN), jnp.float32)

        sig, out = infnet_forward(x, packed)
        jax.block_until_ready((sig, out))

        ref_sig, ref_out = reference_forward(x, params)
        assert sig.shape == (B, D_OUT) and out.shape == (B, D_OUT)
        # bf16 weights/activations + bf16 output stores -> loosened tolerances
        # vs the f32 reference.
        assert jnp.allclose(out, ref_out, atol=6e-2, rtol=6e-2), \
            (B, float(jnp.max(jnp.abs(out - ref_out))))
        assert jnp.allclose(sig, ref_sig, atol=2.5e-2, rtol=2.5e-2), \
            (B, float(jnp.max(jnp.abs(sig - ref_sig))))

    print("KERNEL_OK")
</pallas_src>

<mosaic_0001>
module attributes {stable_mosaic.version = 11 : i64} {
  func.func @infnet_kernel(%arg0: i32, %arg1: memref<8x1836xf32, #tpu.memory_space<vmem>>, %arg2: memref<1836x256xbf16, #tpu.memory_space<vmem>>, %arg3: memref<1x256xf32, #tpu.memory_space<vmem>>, %arg4: memref<256x256xbf16, #tpu.memory_space<vmem>>, %arg5: memref<1x256xf32, #tpu.memory_space<vmem>>, %arg6: memref<256x256xbf16, #tpu.memory_space<vmem>>, %arg7: memref<8x256xbf16, #tpu.memory_space<vmem>>, %arg8: memref<8x256xbf16, #tpu.memory_space<vmem>>) attributes {dimension_semantics = [#tpu.dimension_semantics<parallel>], iteration_bounds = array<i64: 1>, scalar_prefetch = 0 : i64, scratch_operands = 0 : i64, tpu.core_type = #tpu.core_type<tc>, window_params = [{transform_indices = @transform_0, window_bounds = array<i64: 8, 1836>}, {pipeline_mode = #tpu.pipeline_mode<synchronous>, transform_indices = @transform_1, window_bounds = array<i64: 1836, 256>}, {pipeline_mode = #tpu.pipeline_mode<synchronous>, transform_indices = @transform_2, window_bounds = array<i64: 1, 256>}, {pipeline_mode = #tpu.pipeline_mode<synchronous>, transform_indices = @transform_3, window_bounds = array<i64: 256, 256>}, {pipeline_mode = #tpu.pipeline_mode<synchronous>, transform_indices = @transform_4, window_bounds = array<i64: 1, 256>}, {pipeline_mode = #tpu.pipeline_mode<synchronous>, transform_indices = @transform_5, window_bounds = array<i64: 256, 256>}, {transform_indices = @transform_6, window_bounds = array<i64: 8, 256>}, {transform_indices = @transform_7, window_bounds = array<i64: 8, 256>}]} {
    %c0 = arith.constant 0 : index
    %c0_0 = arith.constant 0 : index
    %0 = vector.load %arg1[%c0, %c0_0] : memref<8x1836xf32, #tpu.memory_space<vmem>>, vector<8x1836xf32>
    %1 = arith.truncf %0 : vector<8x1836xf32> to vector<8x1836xbf16>
    %c0_1 = arith.constant 0 : index
    %c0_2 = arith.constant 0 : index
    %2 = vector.load %arg2[%c0_1, %c0_2] : memref<1836x256xbf16, #tpu.memory_space<vmem>>, vector<1836x256xbf16>
    %cst = arith.constant dense<0.000000e+00> : vector<8x256xf32>
    %3 = tpu.matmul %1, %2, %cst {dimension_numbers = #tpu.dot_dimension_numbers<[1], [0], [0], [1], [0, 0, 1, 1], [], []>} : vector<8x1836xbf16>, vector<1836x256xbf16>, vector<8x256xf32> -> vector<8x256xf32>
    %c0_3 = arith.constant 0 : index
    %c0_4 = arith.constant 0 : index
    %4 = vector.load %arg3[%c0_3, %c0_4] : memref<1x256xf32, #tpu.memory_space<vmem>>, vector<1x256xf32>
    %5 = vector.broadcast %4 : vector<1x256xf32> to vector<8x256xf32>
    %6 = arith.addf %3, %5 : vector<8x256xf32>
    %cst_5 = arith.constant 0.000000e+00 : f32
    %7 = vector.broadcast %cst_5 : f32 to vector<8x256xf32>
    %8 = arith.maximumf %6, %7 : vector<8x256xf32>
    %9 = arith.truncf %8 : vector<8x256xf32> to vector<8x256xbf16>
    %c0_6 = arith.constant 0 : index
    %c0_7 = arith.constant 0 : index
    %10 = vector.load %arg4[%c0_6, %c0_7] : memref<256x256xbf16, #tpu.memory_space<vmem>>, vector<256x256xbf16>
    %cst_8 = arith.constant dense<0.000000e+00> : vector<8x256xf32>
    %11 = tpu.matmul %9, %10, %cst_8 {dimension_numbers = #tpu.dot_dimension_numbers<[1], [0], [0], [1], [0, 0, 1, 1], [], []>} : vector<8x256xbf16>, vector<256x256xbf16>, vector<8x256xf32> -> vector<8x256xf32>
    %c0_9 = arith.constant 0 : index
    %c0_10 = arith.constant 0 : index
    %12 = vector.load %arg5[%c0_9, %c0_10] : memref<1x256xf32, #tpu.memory_space<vmem>>, vector<1x256xf32>
    %13 = vector.broadcast %12 : vector<1x256xf32> to vector<8x256xf32>
    %14 = arith.addf %11, %13 : vector<8x256xf32>
    %cst_11 = arith.constant 0.000000e+00 : f32
    %15 = vector.broadcast %cst_11 : f32 to vector<8x256xf32>
    %16 = arith.maximumf %14, %15 : vector<8x256xf32>
    %17 = arith.truncf %16 : vector<8x256xf32> to vector<8x256xbf16>
    %c0_12 = arith.constant 0 : index
    %c0_13 = arith.constant 0 : index
    %18 = vector.load %arg6[%c0_12, %c0_13] : memref<256x256xbf16, #tpu.memory_space<vmem>>, vector<256x256xbf16>
    %cst_14 = arith.constant dense<0.000000e+00> : vector<8x256xf32>
    %19 = tpu.matmul %17, %18, %cst_14 {dimension_numbers = #tpu.dot_dimension_numbers<[1], [0], [0], [1], [0, 0, 1, 1], [], []>} : vector<8x256xbf16>, vector<256x256xbf16>, vector<8x256xf32> -> vector<8x256xf32>
    %20 = arith.truncf %19 : vector<8x256xf32> to vector<8x256xbf16>
    %c0_15 = arith.constant 0 : index
    %c0_16 = arith.constant 0 : index
    %21 = vector.load %arg8[%c0_15, %c0_16] : memref<8x256xbf16, #tpu.memory_space<vmem>>, vector<8x256xbf16>
    tpu.vector_store %arg8[%c0_15, %c0_16], %20 {strides = array<i32>} : memref<8x256xbf16, #tpu.memory_space<vmem>>, vector<8x256xbf16>,
    %cst_17 = arith.constant 5.000000e-01 : f32
    %22 = vector.broadcast %cst_17 : f32 to vector<8x256xf32>
    %23 = arith.mulf %22, %19 : vector<8x256xf32>
    %24 = math.tanh %23 : vector<8x256xf32>
    %cst_18 = arith.constant 5.000000e-01 : f32
    %25 = vector.broadcast %cst_18 : f32 to vector<8x256xf32>
    %26 = arith.mulf %25, %24 : vector<8x256xf32>
    %cst_19 = arith.constant 5.000000e-01 : f32
    %27 = vector.broadcast %cst_19 : f32 to vector<8x256xf32>
    %28 = arith.addf %26, %27 : vector<8x256xf32>
    %29 = arith.truncf %28 : vector<8x256xf32> to vector<8x256xbf16>
    %c0_20 = arith.constant 0 : index
    %c0_21 = arith.constant 0 : index
    %30 = vector.load %arg7[%c0_20, %c0_21] : memref<8x256xbf16, #tpu.memory_space<vmem>>, vector<8x256xbf16>
    tpu.vector_store %arg7[%c0_20, %c0_21], %29 {strides = array<i32>} : memref<8x256xbf16, #tpu.memory_space<vmem>>, vector<8x256xbf16>,
    return
  }
  func.func @transform_0(%arg0: i32) -> (i32, i32) {
    %c0_i32 = arith.constant 0 : i32
    %c0_i32_0 = arith.constant 0 : i32
    return %arg0, %c0_i32 : i32, i32
  }
  func.func @transform_1(%arg0: i32) -> (i32, i32) {
    %c0_i32 = arith.constant 0 : i32
    %c0_i32_0 = arith.constant 0 : i32
    %c0_i32_1 = arith.constant 0 : i32
    return %c0_i32, %c0_i32_0 : i32, i32
  }
  func.func @transform_2(%arg0: i32) -> (i32, i32) {
    %c0_i32 = arith.constant 0 : i32
    %c0_i32_0 = arith.constant 0 : i32
    %c0_i32_1 = arith.constant 0 : i32
    return %c0_i32, %c0_i32_0 : i32, i32
  }
  func.func @transform_3(%arg0: i32) -> (i32, i32) {
    %c0_i32 = arith.constant 0 : i32
    %c0_i32_0 = arith.constant 0 : i32
    %c0_i32_1 = arith.constant 0 : i32
    return %c0_i32, %c0_i32_0 : i32, i32
  }
  func.func @transform_4(%arg0: i32) -> (i32, i32) {
    %c0_i32 = arith.constant 0 : i32
    %c0_i32_0 = arith.constant 0 : i32
    %c0_i32_1 = arith.constant 0 : i32
    return %c0_i32, %c0_i32_0 : i32, i32
  }
  func.func @transform_5(%arg0: i32) -> (i32, i32) {
    %c0_i32 = arith.constant 0 : i32
    %c0_i32_0 = arith.constant 0 : i32
    %c0_i32_1 = arith.constant 0 : i32
    return %c0_i32, %c0_i32_0 : i32, i32
  }
  func.func @transform_6(%arg0: i32) -> (i32, i32) {
    %c0_i32 = arith.constant 0 : i32
    %c0_i32_0 = arith.constant 0 : i32
    return %arg0, %c0_i32 : i32, i32
  }
  func.func @transform_7(%arg0: i32) -> (i32, i32) {
    %c0_i32 = arith.constant 0 : i32
    %c0_i32_0 = arith.constant 0 : i32
    return %arg0, %c0_i32 : i32, i32
  }
}

</mosaic_0001>

<llo_original>
// kernel: infnet_forward.1
$region0: #{infnet_forward.1}
  #allocation0 [shape = 'u32[]', space=smem, size = 0x4, offset = 0x4, fixed_abs, tag = 'smem constant byte address 0x4 - core index']
  #allocation1 [shape = 'u32[144,128]{1,0:T(1,128)}', space=vmem, size = 0x12000, scoped, tag = 'internal scratch']
  %s0 = inlined_call_operand.hbm [shape: f32[8,1836], index: 0, kind: input, shape index: {}]
  %s1 = inlined_call_operand.hbm [shape: bf16[1836,256], index: 1, kind: input, shape index: {}]
  %s2 = inlined_call_operand.vmem [shape: f32[1,256], index: 2, kind: input, shape index: {}]
  %s3 = inlined_call_operand.hbm [shape: bf16[256,256], index: 3, kind: input, shape index: {}]
  %s4 = inlined_call_operand.vmem [shape: f32[1,256], index: 4, kind: input, shape index: {}]
  %s5 = inlined_call_operand.hbm [shape: bf16[256,256], index: 5, kind: input, shape index: {}]
  %s6 = inlined_call_operand.vmem [shape: bf16[8,256], index: 6, kind: output, shape index: {0}]
  %s7 = inlined_call_operand.vmem [shape: bf16[8,256], index: 7, kind: output, shape index: {1}]
  %8 = xla_tuple %s6, %s7
  %s9 = sld [smem:[#allocation0]]
  $region58: #{infnet_forward.1} parent=0
    _
  %s11 = ssub.s32 1, %s9
  %s12 = scalar_select 0, %s11, %s9
  $region1: #{infnet_forward.1} parent=0
    #allocation2 [shape = 'u8[61440]{0}', space=vmem, size = 0xf000, scoped, tag = 'input window, operand 0, single buffered']
    #allocation3 [shape = 's32[1]{0}', space=sflag, size = 0x4, scoped, tag = 'scoped memory for infnet_forward.1']
    #allocation4 [shape = 'u8[942080]{0}', space=vmem, size = 0xe6000, scoped, tag = 'input window, operand 1, single buffered']
    #allocation5 [shape = 's32[1]{0}', space=sflag, size = 0x4, scoped, tag = 'scoped memory for infnet_forward.1']
    #allocation6 [shape = 'u8[131072]{0}', space=vmem, size = 0x20000, scoped, tag = 'input window, operand 3, single buffered']
    #allocation7 [shape = 'u8[131072]{0}', space=vmem, size = 0x20000, scoped, tag = 'input window, operand 5, single buffered']
    #allocation8 [shape = 's32[1]{0}', space=sflag, size = 0x4, scoped, tag = 'scoped memory for infnet_forward.1']
    %13 = vsyncpa [#allocation3], 0
    %14 = vsyncpa [#allocation5], 0
    %15 = vsyncpa [#allocation8], 0
    // Predicated region
    $region2: #{infnet_forward.1} parent=1 // pred_check
      _
    $region3: #{infnet_forward.1} parent=1 // pred_check_branch
      %17 = sbr.rel (0) target = $region5
    $region4: #{infnet_forward.1} parent=1 // pred_region
      %s19 = ssub.s32 1920, 1920
      %20 = vsyncadd [#allocation3], %s19
      %s22 = sshll.u32 [#allocation2], 4
      %s23 = int_to_ptr.vmem [resolvable:$true] %s22
      %25 = dma.hbm_to_vmem [thread:$0]  %s0, 1920, %s23, [#allocation3]
    $region5: #{infnet_forward.1} parent=1 // pred_fallthru
      _
    // Predicated region
    $region6: #{infnet_forward.1} parent=1 // pred_check
      _
    $region7: #{infnet_forward.1} parent=1 // pred_check_branch
      %27 = sbr.rel (0) target = $region9
    $region8: #{infnet_forward.1} parent=1 // pred_region
      %s29 = ssub.s32 29440, 29440
      %30 = vsyncadd [#allocation5], %s29
      %s31 = sshll.u32 [#allocation4], 4
      %s32 = int_to_ptr.vmem [resolvable:$true] %s31
      %37 = dma.hbm_to_vmem [thread:$0]  %s1, 29440, %s32, [#allocation5], 128, 128, 8
    $region9: #{infnet_forward.1} parent=1 // pred_fallthru
      _
    // Predicated region
    $region10: #{infnet_forward.1} parent=1 // pred_check
      _
    $region11: #{infnet_forward.1} parent=1 // pred_check_branch
      %39 = sbr.rel (0) target = $region13
    $region12: #{infnet_forward.1} parent=1 // pred_region
      _
    $region13: #{infnet_forward.1} parent=1 // pred_fallthru
      _
    // Predicated region
    $region14: #{infnet_forward.1} parent=1 // pred_check
      _
    $region15: #{infnet_forward.1} parent=1 // pred_check_branch
      %41 = sbr.rel (0) target = $region17
    $region16: #{infnet_forward.1} parent=1 // pred_region
      %s43 = ssub.s32 4096, 4096
      %44 = vsyncadd [#allocation5], %s43
      %s45 = sshll.u32 [#allocation6], 4
      %s46 = int_to_ptr.vmem [resolvable:$true] %s45
      %51 = dma.hbm_to_vmem [thread:$0]  %s3, 4096, %s46, [#allocation5], 128, 128, 8
    $region17: #{infnet_forward.1} parent=1 // pred_fallthru
      _
    // Predicated region
    $region18: #{infnet_forward.1} parent=1 // pred_check
      _
    $region19: #{infnet_forward.1} parent=1 // pred_check_branch
      %53 = sbr.rel (0) target = $region21
    $region20: #{infnet_forward.1} parent=1 // pred_region
      _
    $region21: #{infnet_forward.1} parent=1 // pred_fallthru
      _
    // Predicated region
    $region22: #{infnet_forward.1} parent=1 // pred_check
      _
    $region23: #{infnet_forward.1} parent=1 // pred_check_branch
      %55 = sbr.rel (0) target = $region25
    $region24: #{infnet_forward.1} parent=1 // pred_region
      %s57 = ssub.s32 4096, 4096
      %58 = vsyncadd [#allocation8], %s57
      %s59 = sshll.u32 [#allocation7], 4
      %s60 = int_to_ptr.vmem [resolvable:$true] %s59
      %65 = dma.hbm_to_vmem [thread:$0]  %s5, 4096, %s60, [#allocation8], 128, 128, 8
    $region25: #{infnet_forward.1} parent=1 // pred_fallthru
      _
    // Predicated region
    $region26: #{infnet_forward.1} parent=1 // pred_check
      _
    $region27: #{infnet_forward.1} parent=1 // pred_check_branch
      %67 = sbr.rel (0) target = $region29
    $region28: #{infnet_forward.1} parent=1 // pred_region
      %68 = dma.done [#allocation3], 1920
    $region29: #{infnet_forward.1} parent=1 // pred_fallthru
      _
    // Predicated region
    $region30: #{infnet_forward.1} parent=1 // pred_check
      _
    $region31: #{infnet_forward.1} parent=1 // pred_check_branch
      %70 = sbr.rel (0) target = $region33
    $region32: #{infnet_forward.1} parent=1 // pred_region
      %71 = dma.done [#allocation5], 29440
    $region33: #{infnet_forward.1} parent=1 // pred_fallthru
      _
    // Predicated region
    $region34: #{infnet_forward.1} parent=1 // pred_check
      _
    $region35: #{infnet_forward.1} parent=1 // pred_check_branch
      %73 = sbr.rel (0) target = $region37
    $region36: #{infnet_forward.1} parent=1 // pred_region
      %74 = dma.done [#allocation5], 4096
    $region37: #{infnet_forward.1} parent=1 // pred_fallthru
      _
    // Predicated region
    $region38: #{infnet_forward.1} parent=1 // pred_check
      _
    $region39: #{infnet_forward.1} parent=1 // pred_check_branch
      %76 = sbr.rel (0) target = $region41
    $region40: #{infnet_forward.1} parent=1 // pred_region
      %77 = dma.done [#allocation8], 4096
    $region41: #{infnet_forward.1} parent=1 // pred_fallthru
      _
    %v79 = vld [vmem:[#allocation2] sm:$0xff]
    %v80 = vld [vmem:[#allocation2 + $0x8] sm:$0xff]
    %v81 = vld [vmem:[#allocation2 + $0x10] sm:$0xff]
    %v82 = vld [vmem:[#allocation2 + $0x18] sm:$0xff]
    %v83 = vld [vmem:[#allocation2 + $0x20] sm:$0xff]
    %v84 = vld [vmem:[#allocation2 + $0x28] sm:$0xff]
    %v85 = vld [vmem:[#allocation2 + $0x30] sm:$0xff]
    %v86 = vld [vmem:[#allocation2 + $0x38] sm:$0xff]
    %v87 = vld [vmem:[#allocation2 + $0x40] sm:$0xff]
    %v88 = vld [vmem:[#allocation2 + $0x48] sm:$0xff]
    %v89 = vld [vmem:[#allocation2 + $0x50] sm:$0xff]
    %v90 = vld [vmem:[#allocation2 + $0x58] sm:$0xff]
    %v91 = vld [vmem:[#allocation2 + $0x60] sm:$0xff]
    %v92 = vld [vmem:[#allocation2 + $0x68] sm:$0xff]
    %v93 = vld [vmem:[#allocation2 + $0x70] sm:$0xff]
    %v94 = vpack.c.bf16 %v79, %v79
    %v95 = vpack.c.bf16 %v80, %v80
    %v96 = vpack.c.bf16 %v81, %v81
    %v97 = vpack.c.bf16 %v82, %v82
    %v98 = vpack.c.bf16 %v83, %v83
    %v99 = vpack.c.bf16 %v84, %v84
    %v100 = vpack.c.bf16 %v85, %v85
    %v101 = vpack.c.bf16 %v86, %v86
    %v102 = vpack.c.bf16 %v87, %v87
    %v103 = vpack.c.bf16 %v88, %v88
    %v104 = vpack.c.bf16 %v89, %v89
    %v105 = vpack.c.bf16 %v90, %v90
    %v106 = vpack.c.bf16 %v91, %v91
    %v107 = vpack.c.bf16 %v92, %v92
    %v108 = vpack.c.bf16 %v93, %v93
    %v109 = vld [vmem:[#allocation4] sm:$0xff]
    %v110 = vld [vmem:[#allocation4 + $0x8] sm:$0xff]
    %v111 = vld [vmem:[#allocation4 + $0x10] sm:$0xff]
    %v112 = vld [vmem:[#allocation4 + $0x18] sm:$0xff]
    %v113 = vld [vmem:[#allocation4 + $0x20] sm:$0xff]
    %v114 = vld [vmem:[#allocation4 + $0x28] sm:$0xff]
    %v115 = vld [vmem:[#allocation4 + $0x30] sm:$0xff]
    %v116 = vld [vmem:[#allocation4 + $0x38] sm:$0xff]
    %v117 = vld [vmem:[#allocation4 + $0x40] sm:$0xff]
    %v118 = vld [vmem:[#allocation4 + $0x48] sm:$0xff]
    %v119 = vld [vmem:[#allocation4 + $0x50] sm:$0xff]
    %v120 = vld [vmem:[#allocation4 + $0x58] sm:$0xff]
    %v121 = vld [vmem:[#allocation4 + $0x60] sm:$0xff]
    %v122 = vld [vmem:[#allocation4 + $0x68] sm:$0xff]
    %v123 = vld [vmem:[#allocation4 + $0x70] sm:$0xff]
    %v124 = vld [vmem:[#allocation4 + $0x78] sm:$0xff]
    %v125 = vld [vmem:[#allocation4 + $0x80] sm:$0xff]
    %v126 = vld [vmem:[#allocation4 + $0x88] sm:$0xff]
    %v127 = vld [vmem:[#allocation4 + $0x90] sm:$0xff]
    %v128 = vld [vmem:[#allocation4 + $0x98] sm:$0xff]
    %v129 = vld [vmem:[#allocation4 + $0xa0] sm:$0xff]
    %v130 = vld [vmem:[#allocation4 + $0xa8] sm:$0xff]
    %v131 = vld [vmem:[#allocation4 + $0xb0] sm:$0xff]
    %v132 = vld [vmem:[#allocation4 + $0xb8] sm:$0xff]
    %v133 = vld [vmem:[#allocation4 + $0xc0] sm:$0xff]
    %v134 = vld [vmem:[#allocation4 + $0xc8] sm:$0xff]
    %v135 = vld [vmem:[#allocation4 + $0xd0] sm:$0xff]
    %v136 = vld [vmem:[#allocation4 + $0xd8] sm:$0xff]
    %v137 = vld [vmem:[#allocation4 + $0xe0] sm:$0xff]
    %v138 = vld [vmem:[#allocation4 + $0xe8] sm:$0xff]
    %v139 = vld [vmem:[#allocation4 + $0xf0] sm:$0xff]
    %v140 = vld [vmem:[#allocation4 + $0xf8] sm:$0xff]
    %v141 = vld [vmem:[#allocation4 + $0x100] sm:$0xff]
    %v142 = vld [vmem:[#allocation4 + $0x108] sm:$0xff]
    %v143 = vld [vmem:[#allocation4 + $0x110] sm:$0xff]
    %v144 = vld [vmem:[#allocation4 + $0x118] sm:$0xff]
    %v145 = vld [vmem:[#allocation4 + $0x120] sm:$0xff]
    %v146 = vld [vmem:[#allocation4 + $0x128] sm:$0xff]
    %v147 = vld [vmem:[#allocation4 + $0x130] sm:$0xff]
    %v148 = vld [vmem:[#allocation4 + $0x138] sm:$0xff]
    %v149 = vld [vmem:[#allocation4 + $0x140] sm:$0xff]
    %v150 = vld [vmem:[#allocation4 + $0x148] sm:$0xff]
    %v151 = vld [vmem:[#allocation4 + $0x150] sm:$0xff]
    %v152 = vld [vmem:[#allocation4 + $0x158] sm:$0xff]
    %v153 = vld [vmem:[#allocation4 + $0x160] sm:$0xff]
    %v154 = vld [vmem:[#allocation4 + $0x168] sm:$0xff]
    %v155 = vld [vmem:[#allocation4 + $0x170] sm:$0xff]
    %v156 = vld [vmem:[#allocation4 + $0x178] sm:$0xff]
    %v157 = vld [vmem:[#allocation4 + $0x180] sm:$0xff]
    %v158 = vld [vmem:[#allocation4 + $0x188] sm:$0xff]
    %v159 = vld [vmem:[#allocation4 + $0x190] sm:$0xff]
    %v160 = vld [vmem:[#allocation4 + $0x198] sm:$0xff]
    %v161 = vld [vmem:[#allocation4 + $0x1a0] sm:$0xff]
    %v162 = vld [vmem:[#allocation4 + $0x1a8] sm:$0xff]
    %v163 = vld [vmem:[#allocation4 + $0x1b0] sm:$0xff]
    %v164 = vld [vmem:[#allocation4 + $0x1b8] sm:$0xff]
    %v165 = vld [vmem:[#allocation4 + $0x1c0] sm:$0xff]
    %v166 = vld [vmem:[#allocation4 + $0x1c8] sm:$0xff]
    %v167 = vld [vmem:[#allocation4 + $0x1d0] sm:$0xff]
    %v168 = vld [vmem:[#allocation4 + $0x1d8] sm:$0xff]
    %v169 = vld [vmem:[#allocation4 + $0x1e0] sm:$0xff]
    %v170 = vld [vmem:[#allocation4 + $0x1e8] sm:$0xff]
    %v171 = vld [vmem:[#allocation4 + $0x1f0] sm:$0xff]
    %v172 = vld [vmem:[#allocation4 + $0x1f8] sm:$0xff]
    %v173 = vld [vmem:[#allocation4 + $0x200] sm:$0xff]
    %v174 = vld [vmem:[#allocation4 + $0x208] sm:$0xff]
    %v175 = vld [vmem:[#allocation4 + $0x210] sm:$0xff]
    %v176 = vld [vmem:[#allocation4 + $0x218] sm:$0xff]
    %v177 = vld [vmem:[#allocation4 + $0x220] sm:$0xff]
    %v178 = vld [vmem:[#allocation4 + $0x228] sm:$0xff]
    %v179 = vld [vmem:[#allocation4 + $0x230] sm:$0xff]
    %v180 = vld [vmem:[#allocation4 + $0x238] sm:$0xff]
    %v181 = vld [vmem:[#allocation4 + $0x240] sm:$0xff]
    %v182 = vld [vmem:[#allocation4 + $0x248] sm:$0xff]
    %v183 = vld [vmem:[#allocation4 + $0x250] sm:$0xff]
    %v184 = vld [vmem:[#allocation4 + $0x258] sm:$0xff]
    %v185 = vld [vmem:[#allocation4 + $0x260] sm:$0xff]
    %v186 = vld [vmem:[#allocation4 + $0x268] sm:$0xff]
    %v187 = vld [vmem:[#allocation4 + $0x270] sm:$0xff]
    %v188 = vld [vmem:[#allocation4 + $0x278] sm:$0xff]
    %v189 = vld [vmem:[#allocation4 + $0x280] sm:$0xff]
    %v190 = vld [vmem:[#allocation4 + $0x288] sm:$0xff]
    %v191 = vld [vmem:[#allocation4 + $0x290] sm:$0xff]
    %v192 = vld [vmem:[#allocation4 + $0x298] sm:$0xff]
    %v193 = vld [vmem:[#allocation4 + $0x2a0] sm:$0xff]
    %v194 = vld [vmem:[#allocation4 + $0x2a8] sm:$0xff]
    %v195 = vld [vmem:[#allocation4 + $0x2b0] sm:$0xff]
    %v196 = vld [vmem:[#allocation4 + $0x2b8] sm:$0xff]
    %v197 = vld [vmem:[#allocation4 + $0x2c0] sm:$0xff]
    %v198 = vld [vmem:[#allocation4 + $0x2c8] sm:$0xff]
    %v199 = vld [vmem:[#allocation4 + $0x2d0] sm:$0xff]
    %v200 = vld [vmem:[#allocation4 + $0x2d8] sm:$0xff]
    %v201 = vld [vmem:[#allocation4 + $0x2e0] sm:$0xff]
    %v202 = vld [vmem:[#allocation4 + $0x2e8] sm:$0xff]
    %v203 = vld [vmem:[#allocation4 + $0x2f0] sm:$0xff]
    %v204 = vld [vmem:[#allocation4 + $0x2f8] sm:$0xff]
    %v205 = vld [vmem:[#allocation4 + $0x300] sm:$0xff]
    %v206 = vld [vmem:[#allocation4 + $0x308] sm:$0xff]
    %v207 = vld [vmem:[#allocation4 + $0x310] sm:$0xff]
    %v208 = vld [vmem:[#allocation4 + $0x318] sm:$0xff]
    %v209 = vld [vmem:[#allocation4 + $0x320] sm:$0xff]
    %v210 = vld [vmem:[#allocation4 + $0x328] sm:$0xff]
    %v211 = vld [vmem:[#allocation4 + $0x330] sm:$0xff]
    %v212 = vld [vmem:[#allocation4 + $0x338] sm:$0xff]
    %v213 = vld [vmem:[#allocation4 + $0x340] sm:$0xff]
    %v214 = vld [vmem:[#allocation4 + $0x348] sm:$0xff]
    %v215 = vld [vmem:[#allocation4 + $0x350] sm:$0xff]
    %v216 = vld [vmem:[#allocation4 + $0x358] sm:$0xff]
    %v217 = vld [vmem:[#allocation4 + $0x360] sm:$0xff]
    %v218 = vld [vmem:[#allocation4 + $0x368] sm:$0xff]
    %v219 = vld [vmem:[#allocation4 + $0x370] sm:$0xff]
    %v220 = vld [vmem:[#allocation4 + $0x378] sm:$0xff]
    %v221 = vld [vmem:[#allocation4 + $0x380] sm:$0xff]
    %v222 = vld [vmem:[#allocation4 + $0x388] sm:$0xff]
    %v223 = vld [vmem:[#allocation4 + $0x390] sm:$0xff]
    %v224 = vld [vmem:[#allocation4 + $0x398] sm:$0xff]
    %v225 = vld [vmem:[#allocation4 + $0x3a0] sm:$0xff]
    %v226 = vld [vmem:[#allocation4 + $0x3a8] sm:$0xff]
    %v227 = vld [vmem:[#allocation4 + $0x3b0] sm:$0xff]
    %v228 = vld [vmem:[#allocation4 + $0x3b8] sm:$0xff]
    %v229 = vld [vmem:[#allocation4 + $0x3c0] sm:$0xff]
    %v230 = vld [vmem:[#allocation4 + $0x3c8] sm:$0xff]
    %v231 = vld [vmem:[#allocation4 + $0x3d0] sm:$0xff]
    %v232 = vld [vmem:[#allocation4 + $0x3d8] sm:$0xff]
    %v233 = vld [vmem:[#allocation4 + $0x3e0] sm:$0xff]
    %v234 = vld [vmem:[#allocation4 + $0x3e8] sm:$0xff]
    %v235 = vld [vmem:[#allocation4 + $0x3f0] sm:$0xff]
    %v236 = vld [vmem:[#allocation4 + $0x3f8] sm:$0xff]
    %v237 = vld [vmem:[#allocation4 + $0x400] sm:$0xff]
    %v238 = vld [vmem:[#allocation4 + $0x408] sm:$0xff]
    %v239 = vld [vmem:[#allocation4 + $0x410] sm:$0xff]
    %v240 = vld [vmem:[#allocation4 + $0x418] sm:$0xff]
    %v241 = vld [vmem:[#allocation4 + $0x420] sm:$0xff]
    %v242 = vld [vmem:[#allocation4 + $0x428] sm:$0xff]
    %v243 = vld [vmem:[#allocation4 + $0x430] sm:$0xff]
    %v244 = vld [vmem:[#allocation4 + $0x438] sm:$0xff]
    %v245 = vld [vmem:[#allocation4 + $0x440] sm:$0xff]
    %v246 = vld [vmem:[#allocation4 + $0x448] sm:$0xff]
    %v247 = vld [vmem:[#allocation4 + $0x450] sm:$0xff]
    %v248 = vld [vmem:[#allocation4 + $0x458] sm:$0xff]
    %v249 = vld [vmem:[#allocation4 + $0x460] sm:$0xff]
    %v250 = vld [vmem:[#allocation4 + $0x468] sm:$0xff]
    %v251 = vld [vmem:[#allocation4 + $0x470] sm:$0xff]
    %v252 = vld [vmem:[#allocation4 + $0x478] sm:$0xff]
    %v253 = vld [vmem:[#allocation4 + $0x480] sm:$0xff]
    %v254 = vld [vmem:[#allocation4 + $0x488] sm:$0xff]
    %v255 = vld [vmem:[#allocation4 + $0x490] sm:$0xff]
    %v256 = vld [vmem:[#allocation4 + $0x498] sm:$0xff]
    %v257 = vld [vmem:[#allocation4 + $0x4a0] sm:$0xff]
    %v258 = vld [vmem:[#allocation4 + $0x4a8] sm:$0xff]
    %v259 = vld [vmem:[#allocation4 + $0x4b0] sm:$0xff]
    %v260 = vld [vmem:[#allocation4 + $0x4b8] sm:$0xff]
    %v261 = vld [vmem:[#allocation4 + $0x4c0] sm:$0xff]
    %v262 = vld [vmem:[#allocation4 + $0x4c8] sm:$0xff]
    %v263 = vld [vmem:[#allocation4 + $0x4d0] sm:$0xff]
    %v264 = vld [vmem:[#allocation4 + $0x4d8] sm:$0xff]
    %v265 = vld [vmem:[#allocation4 + $0x4e0] sm:$0xff]
    %v266 = vld [vmem:[#allocation4 + $0x4e8] sm:$0xff]
    %v267 = vld [vmem:[#allocation4 + $0x4f0] sm:$0xff]
    %v268 = vld [vmem:[#allocation4 + $0x4f8] sm:$0xff]
    %v269 = vld [vmem:[#allocation4 + $0x500] sm:$0xff]
    %v270 = vld [vmem:[#allocation4 + $0x508] sm:$0xff]
    %v271 = vld [vmem:[#allocation4 + $0x510] sm:$0xff]
    %v272 = vld [vmem:[#allocation4 + $0x518] sm:$0xff]
    %v273 = vld [vmem:[#allocation4 + $0x520] sm:$0xff]
    %v274 = vld [vmem:[#allocation4 + $0x528] sm:$0xff]
    %v275 = vld [vmem:[#allocation4 + $0x530] sm:$0xff]
    %v276 = vld [vmem:[#allocation4 + $0x538] sm:$0xff]
    %v277 = vld [vmem:[#allocation4 + $0x540] sm:$0xff]
    %v278 = vld [vmem:[#allocation4 + $0x548] sm:$0xff]
    %v279 = vld [vmem:[#allocation4 + $0x550] sm:$0xff]
    %v280 = vld [vmem:[#allocation4 + $0x558] sm:$0xff]
    %v281 = vld [vmem:[#allocation4 + $0x560] sm:$0xff]
    %v282 = vld [vmem:[#allocation4 + $0x568] sm:$0xff]
    %v283 = vld [vmem:[#allocation4 + $0x570] sm:$0xff]
    %v284 = vld [vmem:[#allocation4 + $0x578] sm:$0xff]
    %v285 = vld [vmem:[#allocation4 + $0x580] sm:$0xff]
    %v286 = vld [vmem:[#allocation4 + $0x588] sm:$0xff]
    %v287 = vld [vmem:[#allocation4 + $0x590] sm:$0xff]
    %v288 = vld [vmem:[#allocation4 + $0x598] sm:$0xff]
    %v289 = vld [vmem:[#allocation4 + $0x5a0] sm:$0xff]
    %v290 = vld [vmem:[#allocation4 + $0x5a8] sm:$0xff]
    %v291 = vld [vmem:[#allocation4 + $0x5b0] sm:$0xff]
    %v292 = vld [vmem:[#allocation4 + $0x5b8] sm:$0xff]
    %v293 = vld [vmem:[#allocation4 + $0x5c0] sm:$0xff]
    %v294 = vld [vmem:[#allocation4 + $0x5c8] sm:$0xff]
    %v295 = vld [vmem:[#allocation4 + $0x5d0] sm:$0xff]
    %v296 = vld [vmem:[#allocation4 + $0x5d8] sm:$0xff]
    %v297 = vld [vmem:[#allocation4 + $0x5e0] sm:$0xff]
    %v298 = vld [vmem:[#allocation4 + $0x5e8] sm:$0xff]
    %v299 = vld [vmem:[#allocation4 + $0x5f0] sm:$0xff]
    %v300 = vld [vmem:[#allocation4 + $0x5f8] sm:$0xff]
    %v301 = vld [vmem:[#allocation4 + $0x600] sm:$0xff]
    %v302 = vld [vmem:[#allocation4 + $0x608] sm:$0xff]
    %v303 = vld [vmem:[#allocation4 + $0x610] sm:$0xff]
    %v304 = vld [vmem:[#allocation4 + $0x618] sm:$0xff]
    %v305 = vld [vmem:[#allocation4 + $0x620] sm:$0xff]
    %v306 = vld [vmem:[#allocation4 + $0x628] sm:$0xff]
    %v307 = vld [vmem:[#allocation4 + $0x630] sm:$0xff]
    %v308 = vld [vmem:[#allocation4 + $0x638] sm:$0xff]
    %v309 = vld [vmem:[#allocation4 + $0x640] sm:$0xff]
    %v310 = vld [vmem:[#allocation4 + $0x648] sm:$0xff]
    %v311 = vld [vmem:[#allocation4 + $0x650] sm:$0xff]
    %v312 = vld [vmem:[#allocation4 + $0x658] sm:$0xff]
    %v313 = vld [vmem:[#allocation4 + $0x660] sm:$0xff]
    %v314 = vld [vmem:[#allocation4 + $0x668] sm:$0xff]
    %v315 = vld [vmem:[#allocation4 + $0x670] sm:$0xff]
    %v316 = vld [vmem:[#allocation4 + $0x678] sm:$0xff]
    %v317 = vld [vmem:[#allocation4 + $0x680] sm:$0xff]
    %v318 = vld [vmem:[#allocation4 + $0x688] sm:$0xff]
    %v319 = vld [vmem:[#allocation4 + $0x690] sm:$0xff]
    %v320 = vld [vmem:[#allocation4 + $0x698] sm:$0xff]
    %v321 = vld [vmem:[#allocation4 + $0x6a0] sm:$0xff]
    %v322 = vld [vmem:[#allocation4 + $0x6a8] sm:$0xff]
    %v323 = vld [vmem:[#allocation4 + $0x6b0] sm:$0xff]
    %v324 = vld [vmem:[#allocation4 + $0x6b8] sm:$0xff]
    %v325 = vld [vmem:[#allocation4 + $0x6c0] sm:$0xff]
    %v326 = vld [vmem:[#allocation4 + $0x6c8] sm:$0xff]
    %v327 = vld [vmem:[#allocation4 + $0x6d0] sm:$0xff]
    %v328 = vld [vmem:[#allocation4 + $0x6d8] sm:$0xff]
    %v329 = vld [vmem:[#allocation4 + $0x6e0] sm:$0xff]
    %v330 = vld [vmem:[#allocation4 + $0x6e8] sm:$0xff]
    %v331 = vld [vmem:[#allocation4 + $0x6f0] sm:$0xff]
    %v332 = vld [vmem:[#allocation4 + $0x6f8] sm:$0xff]
    %v333 = vld [vmem:[#allocation4 + $0x700] sm:$0xff]
    %v334 = vld [vmem:[#allocation4 + $0x708] sm:$0xff]
    %v335 = vld [vmem:[#allocation4 + $0x710] sm:$0xff]
    %v336 = vld [vmem:[#allocation4 + $0x718] sm:$0xff]
    %v337 = vld [vmem:[#allocation4 + $0x720] sm:$0xff]
    %v338 = vld [vmem:[#allocation4 + $0x728] sm:$0x33]
    %v339 = vld [vmem:[%s2] sm:$0x3]
    %v341 = vlaneseq
    %v342 = vshrl.u32 %v341, 7
    %v343 = vsub.s32 0, %v342
    %v344 = vrot.slane %v339, %v343
    %v345 = vlaneseq
    %v346 = vshrl.u32 %v345, 7
    %v347 = vsub.s32 1, %v346
    %v348 = vrot.slane %v339, %v347
    %v581 = vunpack.c.l.b16 %v109
    %v582 = vunpack.c.h.b16 %v109
    %v583 = vunpack.c.l.b16 %v110
    %v584 = vunpack.c.h.b16 %v110
    %v585 = vunpack.c.l.b16 %v111
    %v586 = vunpack.c.h.b16 %v111
    %v587 = vunpack.c.l.b16 %v112
    %v588 = vunpack.c.h.b16 %v112
    %v589 = vunpack.c.l.b16 %v113
    %v590 = vunpack.c.h.b16 %v113
    %v591 = vunpack.c.l.b16 %v114
    %v592 = vunpack.c.h.b16 %v114
    %v593 = vunpack.c.l.b16 %v115
    %v594 = vunpack.c.h.b16 %v115
    %v595 = vunpack.c.l.b16 %v116
    %v596 = vunpack.c.h.b16 %v116
    %v597 = vunpack.c.l.b16 %v117
    %v598 = vunpack.c.h.b16 %v117
    %v599 = vunpack.c.l.b16 %v118
    %v600 = vunpack.c.h.b16 %v118
    %v601 = vunpack.c.l.b16 %v119
    %v602 = vunpack.c.h.b16 %v119
    %v603 = vunpack.c.l.b16 %v120
    %v604 = vunpack.c.h.b16 %v120
    %v605 = vunpack.c.l.b16 %v121
    %v606 = vunpack.c.h.b16 %v121
    %v607 = vunpack.c.l.b16 %v122
    %v608 = vunpack.c.h.b16 %v122
    %v609 = vunpack.c.l.b16 %v123
    %v610 = vunpack.c.h.b16 %v123
    %v611 = vunpack.c.l.b16 %v124
    %v612 = vunpack.c.h.b16 %v124
    %v613 = vunpack.c.l.b16 %v125
    %v614 = vunpack.c.h.b16 %v125
    %v615 = vunpack.c.l.b16 %v126
    %v616 = vunpack.c.h.b16 %v126
    %v617 = vunpack.c.l.b16 %v127
    %v618 = vunpack.c.h.b16 %v127
    %v619 = vunpack.c.l.b16 %v128
    %v620 = vunpack.c.h.b16 %v128
    %v621 = vunpack.c.l.b16 %v129
    %v622 = vunpack.c.h.b16 %v129
    %v623 = vunpack.c.l.b16 %v130
    %v624 = vunpack.c.h.b16 %v130
    %v625 = vunpack.c.l.b16 %v131
    %v626 = vunpack.c.h.b16 %v131
    %v627 = vunpack.c.l.b16 %v132
    %v628 = vunpack.c.h.b16 %v132
    %v629 = vunpack.c.l.b16 %v133
    %v630 = vunpack.c.h.b16 %v133
    %v631 = vunpack.c.l.b16 %v134
    %v632 = vunpack.c.h.b16 %v134
    %v633 = vunpack.c.l.b16 %v135
    %v634 = vunpack.c.h.b16 %v135
    %v635 = vunpack.c.l.b16 %v136
    %v636 = vunpack.c.h.b16 %v136
    %v637 = vunpack.c.l.b16 %v137
    %v638 = vunpack.c.h.b16 %v137
    %v639 = vunpack.c.l.b16 %v138
    %v640 = vunpack.c.h.b16 %v138
    %v641 = vunpack.c.l.b16 %v139
    %v642 = vunpack.c.h.b16 %v139
    %v643 = vunpack.c.l.b16 %v140
    %v644 = vunpack.c.h.b16 %v140
    %v645 = vunpack.c.l.b16 %v141
    %v646 = vunpack.c.h.b16 %v141
    %v647 = vunpack.c.l.b16 %v142
    %v648 = vunpack.c.h.b16 %v142
    %v649 = vunpack.c.l.b16 %v143
    %v650 = vunpack.c.h.b16 %v143
    %v651 = vunpack.c.l.b16 %v144
    %v652 = vunpack.c.h.b16 %v144
    %v653 = vunpack.c.l.b16 %v145
    %v654 = vunpack.c.h.b16 %v145
    %v655 = vunpack.c.l.b16 %v146
    %v656 = vunpack.c.h.b16 %v146
    %v657 = vunpack.c.l.b16 %v147
    %v658 = vunpack.c.h.b16 %v147
    %v659 = vunpack.c.l.b16 %v148
    %v660 = vunpack.c.h.b16 %v148
    %v661 = vunpack.c.l.b16 %v149
    %v662 = vunpack.c.h.b16 %v149
    %v663 = vunpack.c.l.b16 %v150
    %v664 = vunpack.c.h.b16 %v150
    %v665 = vunpack.c.l.b16 %v151
    %v666 = vunpack.c.h.b16 %v151
    %v667 = vunpack.c.l.b16 %v152
    %v668 = vunpack.c.h.b16 %v152
    %v669 = vunpack.c.l.b16 %v153
    %v670 = vunpack.c.h.b16 %v153
    %v671 = vunpack.c.l.b16 %v154
    %v672 = vunpack.c.h.b16 %v154
    %v673 = vunpack.c.l.b16 %v155
    %v674 = vunpack.c.h.b16 %v155
    %v675 = vunpack.c.l.b16 %v156
    %v676 = vunpack.c.h.b16 %v156
    %v677 = vunpack.c.l.b16 %v157
    %v678 = vunpack.c.h.b16 %v157
    %v679 = vunpack.c.l.b16 %v158
    %v680 = vunpack.c.h.b16 %v158
    %v681 = vunpack.c.l.b16 %v159
    %v682 = vunpack.c.h.b16 %v159
    %v683 = vunpack.c.l.b16 %v160
    %v684 = vunpack.c.h.b16 %v160
    %v685 = vunpack.c.l.b16 %v161
    %v686 = vunpack.c.h.b16 %v161
    %v687 = vunpack.c.l.b16 %v162
    %v688 = vunpack.c.h.b16 %v162
    %v689 = vunpack.c.l.b16 %v163
    %v690 = vunpack.c.h.b16 %v163
    %v691 = vunpack.c.l.b16 %v164
    %v692 = vunpack.c.h.b16 %v164
    %v693 = vunpack.c.l.b16 %v165
    %v694 = vunpack.c.h.b16 %v165
    %v695 = vunpack.c.l.b16 %v166
    %v696 = vunpack.c.h.b16 %v166
    %v697 = vunpack.c.l.b16 %v167
    %v698 = vunpack.c.h.b16 %v167
    %v699 = vunpack.c.l.b16 %v168
    %v700 = vunpack.c.h.b16 %v168
    %v701 = vunpack.c.l.b16 %v169
    %v702 = vunpack.c.h.b16 %v169
    %v703 = vunpack.c.l.b16 %v170
    %v704 = vunpack.c.h.b16 %v170
    %v705 = vunpack.c.l.b16 %v171
    %v706 = vunpack.c.h.b16 %v171
    %v707 = vunpack.c.l.b16 %v172
    %v708 = vunpack.c.h.b16 %v172
    %v709 = vunpack.c.l.b16 %v173
    %v710 = vunpack.c.h.b16 %v173
    %v711 = vunpack.c.l.b16 %v174
    %v712 = vunpack.c.h.b16 %v174
    %v713 = vunpack.c.l.b16 %v175
    %v714 = vunpack.c.h.b16 %v175
    %v715 = vunpack.c.l.b16 %v176
    %v716 = vunpack.c.h.b16 %v176
    %v717 = vunpack.c.l.b16 %v177
    %v718 = vunpack.c.h.b16 %v177
    %v719 = vunpack.c.l.b16 %v178
    %v720 = vunpack.c.h.b16 %v178
    %v721 = vunpack.c.l.b16 %v179
    %v722 = vunpack.c.h.b16 %v179
    %v723 = vunpack.c.l.b16 %v180
    %v724 = vunpack.c.h.b16 %v180
    %v725 = vunpack.c.l.b16 %v181
    %v726 = vunpack.c.h.b16 %v181
    %v727 = vunpack.c.l.b16 %v182
    %v728 = vunpack.c.h.b16 %v182
    %v729 = vunpack.c.l.b16 %v183
    %v730 = vunpack.c.h.b16 %v183
    %v731 = vunpack.c.l.b16 %v184
    %v732 = vunpack.c.h.b16 %v184
    %v733 = vunpack.c.l.b16 %v185
    %v734 = vunpack.c.h.b16 %v185
    %v735 = vunpack.c.l.b16 %v186
    %v736 = vunpack.c.h.b16 %v186
    %v737 = vunpack.c.l.b16 %v187
    %v738 = vunpack.c.h.b16 %v187
    %v739 = vunpack.c.l.b16 %v188
    %v740 = vunpack.c.h.b16 %v188
    %v741 = vunpack.c.l.b16 %v189
    %v742 = vunpack.c.h.b16 %v189
    %v743 = vunpack.c.l.b16 %v190
    %v744 = vunpack.c.h.b16 %v190
    %v745 = vunpack.c.l.b16 %v191
    %v746 = vunpack.c.h.b16 %v191
    %v747 = vunpack.c.l.b16 %v192
    %v748 = vunpack.c.h.b16 %v192
    %v749 = vunpack.c.l.b16 %v193
    %v750 = vunpack.c.h.b16 %v193
    %v751 = vunpack.c.l.b16 %v194
    %v752 = vunpack.c.h.b16 %v194
    %v753 = vunpack.c.l.b16 %v195
    %v754 = vunpack.c.h.b16 %v195
    %v755 = vunpack.c.l.b16 %v196
    %v756 = vunpack.c.h.b16 %v196
    %v757 = vunpack.c.l.b16 %v197
    %v758 = vunpack.c.h.b16 %v197
    %v759 = vunpack.c.l.b16 %v198
    %v760 = vunpack.c.h.b16 %v198
    %v761 = vunpack.c.l.b16 %v199
    %v762 = vunpack.c.h.b16 %v199
    %v763 = vunpack.c.l.b16 %v200
    %v764 = vunpack.c.h.b16 %v200
    %v765 = vunpack.c.l.b16 %v201
    %v766 = vunpack.c.h.b16 %v201
    %v767 = vunpack.c.l.b16 %v202
    %v768 = vunpack.c.h.b16 %v202
    %v769 = vunpack.c.l.b16 %v203
    %v770 = vunpack.c.h.b16 %v203
    %v771 = vunpack.c.l.b16 %v204
    %v772 = vunpack.c.h.b16 %v204
    %v773 = vunpack.c.l.b16 %v205
    %v774 = vunpack.c.h.b16 %v205
    %v775 = vunpack.c.l.b16 %v206
    %v776 = vunpack.c.h.b16 %v206
    %v777 = vunpack.c.l.b16 %v207
    %v778 = vunpack.c.h.b16 %v207
    %v779 = vunpack.c.l.b16 %v208
    %v780 = vunpack.c.h.b16 %v208
    %v781 = vunpack.c.l.b16 %v209
    %v782 = vunpack.c.h.b16 %v209
    %v783 = vunpack.c.l.b16 %v210
    %v784 = vunpack.c.h.b16 %v210
    %v785 = vunpack.c.l.b16 %v211
    %v786 = vunpack.c.h.b16 %v211
    %v787 = vunpack.c.l.b16 %v212
    %v788 = vunpack.c.h.b16 %v212
    %v789 = vunpack.c.l.b16 %v213
    %v790 = vunpack.c.h.b16 %v213
    %v791 = vunpack.c.l.b16 %v214
    %v792 = vunpack.c.h.b16 %v214
    %v793 = vunpack.c.l.b16 %v215
    %v794 = vunpack.c.h.b16 %v215
    %v795 = vunpack.c.l.b16 %v216
    %v796 = vunpack.c.h.b16 %v216
    %v797 = vunpack.c.l.b16 %v217
    %v798 = vunpack.c.h.b16 %v217
    %v799 = vunpack.c.l.b16 %v218
    %v800 = vunpack.c.h.b16 %v218
    %v801 = vunpack.c.l.b16 %v219
    %v802 = vunpack.c.h.b16 %v219
    %v803 = vunpack.c.l.b16 %v220
    %v804 = vunpack.c.h.b16 %v220
    %v805 = vunpack.c.l.b16 %v221
    %v806 = vunpack.c.h.b16 %v221
    %v807 = vunpack.c.l.b16 %v222
    %v808 = vunpack.c.h.b16 %v222
    %v809 = vunpack.c.l.b16 %v223
    %v810 = vunpack.c.h.b16 %v223
    %v811 = vunpack.c.l.b16 %v224
    %v812 = vunpack.c.h.b16 %v224
    %v813 = vunpack.c.l.b16 %v225
    %v814 = vunpack.c.h.b16 %v225
    %v815 = vunpack.c.l.b16 %v226
    %v816 = vunpack.c.h.b16 %v226
    %v817 = vunpack.c.l.b16 %v227
    %v818 = vunpack.c.h.b16 %v227
    %v819 = vunpack.c.l.b16 %v228
    %v820 = vunpack.c.h.b16 %v228
    %v821 = vunpack.c.l.b16 %v229
    %v822 = vunpack.c.h.b16 %v229
    %v823 = vunpack.c.l.b16 %v230
    %v824 = vunpack.c.h.b16 %v230
    %v825 = vunpack.c.l.b16 %v231
    %v826 = vunpack.c.h.b16 %v231
    %v827 = vunpack.c.l.b16 %v232
    %v828 = vunpack.c.h.b16 %v232
    %v829 = vunpack.c.l.b16 %v233
    %v830 = vunpack.c.h.b16 %v233
    %v831 = vunpack.c.l.b16 %v234
    %v832 = vunpack.c.h.b16 %v234
    %v833 = vunpack.c.l.b16 %v235
    %v834 = vunpack.c.h.b16 %v235
    %v835 = vunpack.c.l.b16 %v236
    %v836 = vunpack.c.h.b16 %v236
    %v837 = vunpack.c.l.b16 %v237
    %v838 = vunpack.c.h.b16 %v237
    %v839 = vunpack.c.l.b16 %v238
    %v840 = vunpack.c.h.b16 %v238
    %v841 = vunpack.c.l.b16 %v239
    %v842 = vunpack.c.h.b16 %v239
    %v843 = vunpack.c.l.b16 %v240
    %v844 = vunpack.c.h.b16 %v240
    %v845 = vunpack.c.l.b16 %v241
    %v846 = vunpack.c.h.b16 %v241
    %v847 = vunpack.c.l.b16 %v242
    %v848 = vunpack.c.h.b16 %v242
    %v849 = vunpack.c.l.b16 %v243
    %v850 = vunpack.c.h.b16 %v243
    %v851 = vunpack.c.l.b16 %v244
    %v852 = vunpack.c.h.b16 %v244
    %v853 = vunpack.c.l.b16 %v245
    %v854 = vunpack.c.h.b16 %v245
    %v855 = vunpack.c.l.b16 %v246
    %v856 = vunpack.c.h.b16 %v246
    %v857 = vunpack.c.l.b16 %v247
    %v858 = vunpack.c.h.b16 %v247
    %v859 = vunpack.c.l.b16 %v248
    %v860 = vunpack.c.h.b16 %v248
    %v861 = vunpack.c.l.b16 %v249
    %v862 = vunpack.c.h.b16 %v249
    %v863 = vunpack.c.l.b16 %v250
    %v864 = vunpack.c.h.b16 %v250
    %v865 = vunpack.c.l.b16 %v251
    %v866 = vunpack.c.h.b16 %v251
    %v867 = vunpack.c.l.b16 %v252
    %v868 = vunpack.c.h.b16 %v252
    %v869 = vunpack.c.l.b16 %v253
    %v870 = vunpack.c.h.b16 %v253
    %v871 = vunpack.c.l.b16 %v254
    %v872 = vunpack.c.h.b16 %v254
    %v873 = vunpack.c.l.b16 %v255
    %v874 = vunpack.c.h.b16 %v255
    %v875 = vunpack.c.l.b16 %v256
    %v876 = vunpack.c.h.b16 %v256
    %v877 = vunpack.c.l.b16 %v257
    %v878 = vunpack.c.h.b16 %v257
    %v879 = vunpack.c.l.b16 %v258
    %v880 = vunpack.c.h.b16 %v258
    %v881 = vunpack.c.l.b16 %v259
    %v882 = vunpack.c.h.b16 %v259
    %v883 = vunpack.c.l.b16 %v260
    %v884 = vunpack.c.h.b16 %v260
    %v885 = vunpack.c.l.b16 %v261
    %v886 = vunpack.c.h.b16 %v261
    %v887 = vunpack.c.l.b16 %v262
    %v888 = vunpack.c.h.b16 %v262
    %v889 = vunpack.c.l.b16 %v263
    %v890 = vunpack.c.h.b16 %v263
    %v891 = vunpack.c.l.b16 %v264
    %v892 = vunpack.c.h.b16 %v264
    %v893 = vunpack.c.l.b16 %v265
    %v894 = vunpack.c.h.b16 %v265
    %v895 = vunpack.c.l.b16 %v266
    %v896 = vunpack.c.h.b16 %v266
    %v897 = vunpack.c.l.b16 %v267
    %v898 = vunpack.c.h.b16 %v267
    %v899 = vunpack.c.l.b16 %v268
    %v900 = vunpack.c.h.b16 %v268
    %v901 = vunpack.c.l.b16 %v269
    %v902 = vunpack.c.h.b16 %v269
    %v903 = vunpack.c.l.b16 %v270
    %v904 = vunpack.c.h.b16 %v270
    %v905 = vunpack.c.l.b16 %v271
    %v906 = vunpack.c.h.b16 %v271
    %v907 = vunpack.c.l.b16 %v272
    %v908 = vunpack.c.h.b16 %v272
    %v909 = vunpack.c.l.b16 %v273
    %v910 = vunpack.c.h.b16 %v273
    %v911 = vunpack.c.l.b16 %v274
    %v912 = vunpack.c.h.b16 %v274
    %v913 = vunpack.c.l.b16 %v275
    %v914 = vunpack.c.h.b16 %v275
    %v915 = vunpack.c.l.b16 %v276
    %v916 = vunpack.c.h.b16 %v276
    %v917 = vunpack.c.l.b16 %v277
    %v918 = vunpack.c.h.b16 %v277
    %v919 = vunpack.c.l.b16 %v278
    %v920 = vunpack.c.h.b16 %v278
    %v921 = vunpack.c.l.b16 %v279
    %v922 = vunpack.c.h.b16 %v279
    %v923 = vunpack.c.l.b16 %v280
    %v924 = vunpack.c.h.b16 %v280
    %v925 = vunpack.c.l.b16 %v281
    %v926 = vunpack.c.h.b16 %v281
    %v927 = vunpack.c.l.b16 %v282
    %v928 = vunpack.c.h.b16 %v282
    %v929 = vunpack.c.l.b16 %v283
    %v930 = vunpack.c.h.b16 %v283
    %v931 = vunpack.c.l.b16 %v284
    %v932 = vunpack.c.h.b16 %v284
    %v933 = vunpack.c.l.b16 %v285
    %v934 = vunpack.c.h.b16 %v285
    %v935 = vunpack.c.l.b16 %v286
    %v936 = vunpack.c.h.b16 %v286
    %v937 = vunpack.c.l.b16 %v287
    %v938 = vunpack.c.h.b16 %v287
    %v939 = vunpack.c.l.b16 %v288
    %v940 = vunpack.c.h.b16 %v288
    %v941 = vunpack.c.l.b16 %v289
    %v942 = vunpack.c.h.b16 %v289
    %v943 = vunpack.c.l.b16 %v290
    %v944 = vunpack.c.h.b16 %v290
    %v945 = vunpack.c.l.b16 %v291
    %v946 = vunpack.c.h.b16 %v291
    %v947 = vunpack.c.l.b16 %v292
    %v948 = vunpack.c.h.b16 %v292
    %v949 = vunpack.c.l.b16 %v293
    %v950 = vunpack.c.h.b16 %v293
    %v951 = vunpack.c.l.b16 %v294
    %v952 = vunpack.c.h.b16 %v294
    %v953 = vunpack.c.l.b16 %v295
    %v954 = vunpack.c.h.b16 %v295
    %v955 = vunpack.c.l.b16 %v296
    %v956 = vunpack.c.h.b16 %v296
    %v957 = vunpack.c.l.b16 %v297
    %v958 = vunpack.c.h.b16 %v297
    %v959 = vunpack.c.l.b16 %v298
    %v960 = vunpack.c.h.b16 %v298
    %v961 = vunpack.c.l.b16 %v299
    %v962 = vunpack.c.h.b16 %v299
    %v963 = vunpack.c.l.b16 %v300
    %v964 = vunpack.c.h.b16 %v300
    %v965 = vunpack.c.l.b16 %v301
    %v966 = vunpack.c.h.b16 %v301
    %v967 = vunpack.c.l.b16 %v302
    %v968 = vunpack.c.h.b16 %v302
    %v969 = vunpack.c.l.b16 %v303
    %v970 = vunpack.c.h.b16 %v303
    %v971 = vunpack.c.l.b16 %v304
    %v972 = vunpack.c.h.b16 %v304
    %v973 = vunpack.c.l.b16 %v305
    %v974 = vunpack.c.h.b16 %v305
    %v975 = vunpack.c.l.b16 %v306
    %v976 = vunpack.c.h.b16 %v306
    %v977 = vunpack.c.l.b16 %v307
    %v978 = vunpack.c.h.b16 %v307
    %v979 = vunpack.c.l.b16 %v308
    %v980 = vunpack.c.h.b16 %v308
    %v981 = vunpack.c.l.b16 %v309
    %v982 = vunpack.c.h.b16 %v309
    %v983 = vunpack.c.l.b16 %v310
    %v984 = vunpack.c.h.b16 %v310
    %v985 = vunpack.c.l.b16 %v311
    %v986 = vunpack.c.h.b16 %v311
    %v987 = vunpack.c.l.b16 %v312
    %v988 = vunpack.c.h.b16 %v312
    %v989 = vunpack.c.l.b16 %v313
    %v990 = vunpack.c.h.b16 %v313
    %v991 = vunpack.c.l.b16 %v314
    %v992 = vunpack.c.h.b16 %v314
    %v993 = vunpack.c.l.b16 %v315
    %v994 = vunpack.c.h.b16 %v315
    %v995 = vunpack.c.l.b16 %v316
    %v996 = vunpack.c.h.b16 %v316
    %v997 = vunpack.c.l.b16 %v317
    %v998 = vunpack.c.h.b16 %v317
    %v999 = vunpack.c.l.b16 %v318
    %v1000 = vunpack.c.h.b16 %v318
    %v1001 = vunpack.c.l.b16 %v319
    %v1002 = vunpack.c.h.b16 %v319
    %v1003 = vunpack.c.l.b16 %v320
    %v1004 = vunpack.c.h.b16 %v320
    %v1005 = vunpack.c.l.b16 %v321
    %v1006 = vunpack.c.h.b16 %v321
    %v1007 = vunpack.c.l.b16 %v322
    %v1008 = vunpack.c.h.b16 %v322
    %v1009 = vunpack.c.l.b16 %v323
    %v1010 = vunpack.c.h.b16 %v323
    %v1011 = vunpack.c.l.b16 %v324
    %v1012 = vunpack.c.h.b16 %v324
    %v1013 = vunpack.c.l.b16 %v325
    %v1014 = vunpack.c.h.b16 %v325
    %v1015 = vunpack.c.l.b16 %v326
    %v1016 = vunpack.c.h.b16 %v326
    %v1017 = vunpack.c.l.b16 %v327
    %v1018 = vunpack.c.h.b16 %v327
    %v1019 = vunpack.c.l.b16 %v328
    %v1020 = vunpack.c.h.b16 %v328
    %v1021 = vunpack.c.l.b16 %v329
    %v1022 = vunpack.c.h.b16 %v329
    %v1023 = vunpack.c.l.b16 %v330
    %v1024 = vunpack.c.h.b16 %v330
    %v1025 = vunpack.c.l.b16 %v331
    %v1026 = vunpack.c.h.b16 %v331
    %v1027 = vunpack.c.l.b16 %v332
    %v1028 = vunpack.c.h.b16 %v332
    %v1029 = vunpack.c.l.b16 %v333
    %v1030 = vunpack.c.h.b16 %v333
    %v1031 = vunpack.c.l.b16 %v334
    %v1032 = vunpack.c.h.b16 %v334
    %v1033 = vunpack.c.l.b16 %v335
    %v1034 = vunpack.c.h.b16 %v335
    %v1035 = vunpack.c.l.b16 %v336
    %v1036 = vunpack.c.h.b16 %v336
    %v1037 = vunpack.c.l.b16 %v337
    %v1038 = vunpack.c.h.b16 %v337
    %v1039 = vunpack.c.l.b16 %v338
    %v1040 = vunpack.c.h.b16 %v338
    %v1041 = vpack.c.b16 %v583, %v581
    %v1042 = vpack.c.b16 %v584, %v582
    %v1043 = vpack.c.b16 %v587, %v585
    %v1044 = vpack.c.b16 %v588, %v586
    %v1045 = vpack.c.b16 %v591, %v589
    %v1046 = vpack.c.b16 %v592, %v590
    %v1047 = vpack.c.b16 %v595, %v593
    %v1048 = vpack.c.b16 %v596, %v594
    %v1049 = vpack.c.b16 %v599, %v597
    %v1050 = vpack.c.b16 %v600, %v598
    %v1051 = vpack.c.b16 %v603, %v601
    %v1052 = vpack.c.b16 %v604, %v602
    %v1053 = vpack.c.b16 %v607, %v605
    %v1054 = vpack.c.b16 %v608, %v606
    %v1055 = vpack.c.b16 %v611, %v609
    %v1056 = vpack.c.b16 %v612, %v610
    %v1057 = vpack.c.b16 %v615, %v613
    %v1058 = vpack.c.b16 %v616, %v614
    %v1059 = vpack.c.b16 %v619, %v617
    %v1060 = vpack.c.b16 %v620, %v618
    %v1061 = vpack.c.b16 %v623, %v621
    %v1062 = vpack.c.b16 %v624, %v622
    %v1063 = vpack.c.b16 %v627, %v625
    %v1064 = vpack.c.b16 %v628, %v626
    %v1065 = vpack.c.b16 %v631, %v629
    %v1066 = vpack.c.b16 %v632, %v630
    %v1067 = vpack.c.b16 %v635, %v633
    %v1068 = vpack.c.b16 %v636, %v634
    %v1069 = vpack.c.b16 %v639, %v637
    %v1070 = vpack.c.b16 %v640, %v638
    %v1071 = vpack.c.b16 %v643, %v641
    %v1072 = vpack.c.b16 %v644, %v642
    %v1073 = vpack.c.b16 %v647, %v645
    %v1074 = vpack.c.b16 %v648, %v646
    %v1075 = vpack.c.b16 %v651, %v649
    %v1076 = vpack.c.b16 %v652, %v650
    %v1077 = vpack.c.b16 %v655, %v653
    %v1078 = vpack.c.b16 %v656, %v654
    %v1079 = vpack.c.b16 %v659, %v657
    %v1080 = vpack.c.b16 %v660, %v658
    %v1081 = vpack.c.b16 %v663, %v661
    %v1082 = vpack.c.b16 %v664, %v662
    %v1083 = vpack.c.b16 %v667, %v665
    %v1084 = vpack.c.b16 %v668, %v666
    %v1085 = vpack.c.b16 %v671, %v669
    %v1086 = vpack.c.b16 %v672, %v670
    %v1087 = vpack.c.b16 %v675, %v673
    %v1088 = vpack.c.b16 %v676, %v674
    %v1089 = vpack.c.b16 %v679, %v677
    %v1090 = vpack.c.b16 %v680, %v678
    %v1091 = vpack.c.b16 %v683, %v681
    %v1092 = vpack.c.b16 %v684, %v682
    %v1093 = vpack.c.b16 %v687, %v685
    %v1094 = vpack.c.b16 %v688, %v686
    %v1095 = vpack.c.b16 %v691, %v689
    %v1096 = vpack.c.b16 %v692, %v690
    %v1097 = vpack.c.b16 %v695, %v693
    %v1098 = vpack.c.b16 %v696, %v694
    %v1099 = vpack.c.b16 %v699, %v697
    %v1100 = vpack.c.b16 %v700, %v698
    %v1101 = vpack.c.b16 %v703, %v701
    %v1102 = vpack.c.b16 %v704, %v702
    %v1103 = vpack.c.b16 %v707, %v705
    %v1104 = vpack.c.b16 %v708, %v706
    %v1105 = vpack.c.b16 %v711, %v709
    %v1106 = vpack.c.b16 %v712, %v710
    %v1107 = vpack.c.b16 %v715, %v713
    %v1108 = vpack.c.b16 %v716, %v714
    %v1109 = vpack.c.b16 %v719, %v717
    %v1110 = vpack.c.b16 %v720, %v718
    %v1111 = vpack.c.b16 %v723, %v721
    %v1112 = vpack.c.b16 %v724, %v722
    %v1113 = vpack.c.b16 %v727, %v725
    %v1114 = vpack.c.b16 %v728, %v726
    %v1115 = vpack.c.b16 %v731, %v729
    %v1116 = vpack.c.b16 %v732, %v730
    %v1117 = vpack.c.b16 %v735, %v733
    %v1118 = vpack.c.b16 %v736, %v734
    %v1119 = vpack.c.b16 %v739, %v737
    %v1120 = vpack.c.b16 %v740, %v738
    %v1121 = vpack.c.b16 %v743, %v741
    %v1122 = vpack.c.b16 %v744, %v742
    %v1123 = vpack.c.b16 %v747, %v745
    %v1124 = vpack.c.b16 %v748, %v746
    %v1125 = vpack.c.b16 %v751, %v749
    %v1126 = vpack.c.b16 %v752, %v750
    %v1127 = vpack.c.b16 %v755, %v753
    %v1128 = vpack.c.b16 %v756, %v754
    %v1129 = vpack.c.b16 %v759, %v757
    %v1130 = vpack.c.b16 %v760, %v758
    %v1131 = vpack.c.b16 %v763, %v761
    %v1132 = vpack.c.b16 %v764, %v762
    %v1133 = vpack.c.b16 %v767, %v765
    %v1134 = vpack.c.b16 %v768, %v766
    %v1135 = vpack.c.b16 %v771, %v769
    %v1136 = vpack.c.b16 %v772, %v770
    %v1137 = vpack.c.b16 %v775, %v773
    %v1138 = vpack.c.b16 %v776, %v774
    %v1139 = vpack.c.b16 %v779, %v777
    %v1140 = vpack.c.b16 %v780, %v778
    %v1141 = vpack.c.b16 %v783, %v781
    %v1142 = vpack.c.b16 %v784, %v782
    %v1143 = vpack.c.b16 %v787, %v785
    %v1144 = vpack.c.b16 %v788, %v786
    %v1145 = vpack.c.b16 %v791, %v789
    %v1146 = vpack.c.b16 %v792, %v790
    %v1147 = vpack.c.b16 %v795, %v793
    %v1148 = vpack.c.b16 %v796, %v794
    %v1149 = vpack.c.b16 %v799, %v797
    %v1150 = vpack.c.b16 %v800, %v798
    %v1151 = vpack.c.b16 %v803, %v801
    %v1152 = vpack.c.b16 %v804, %v802
    %v1153 = vpack.c.b16 %v807, %v805
    %v1154 = vpack.c.b16 %v808, %v806
    %v1155 = vpack.c.b16 %v811, %v809
    %v1156 = vpack.c.b16 %v812, %v810
    %v1157 = vpack.c.b16 %v815, %v813
    %v1158 = vpack.c.b16 %v816, %v814
    %v1159 = vpack.c.b16 %v819, %v817
    %v1160 = vpack.c.b16 %v820, %v818
    %v1161 = vpack.c.b16 %v823, %v821
    %v1162 = vpack.c.b16 %v824, %v822
    %v1163 = vpack.c.b16 %v827, %v825
    %v1164 = vpack.c.b16 %v828, %v826
    %v1165 = vpack.c.b16 %v831, %v829
    %v1166 = vpack.c.b16 %v832, %v830
    %v1167 = vpack.c.b16 %v835, %v833
    %v1168 = vpack.c.b16 %v836, %v834
    %v1169 = vpack.c.b16 %v839, %v837
    %v1170 = vpack.c.b16 %v840, %v838
    %v1171 = vpack.c.b16 %v843, %v841
    %v1172 = vpack.c.b16 %v844, %v842
    %v1173 = vpack.c.b16 %v847, %v845
    %v1174 = vpack.c.b16 %v848, %v846
    %v1175 = vpack.c.b16 %v851, %v849
    %v1176 = vpack.c.b16 %v852, %v850
    %v1177 = vpack.c.b16 %v855, %v853
    %v1178 = vpack.c.b16 %v856, %v854
    %v1179 = vpack.c.b16 %v859, %v857
    %v1180 = vpack.c.b16 %v860, %v858
    %v1181 = vpack.c.b16 %v863, %v861
    %v1182 = vpack.c.b16 %v864, %v862
    %v1183 = vpack.c.b16 %v867, %v865
    %v1184 = vpack.c.b16 %v868, %v866
    %v1185 = vpack.c.b16 %v871, %v869
    %v1186 = vpack.c.b16 %v872, %v870
    %v1187 = vpack.c.b16 %v875, %v873
    %v1188 = vpack.c.b16 %v876, %v874
    %v1189 = vpack.c.b16 %v879, %v877
    %v1190 = vpack.c.b16 %v880, %v878
    %v1191 = vpack.c.b16 %v883, %v881
    %v1192 = vpack.c.b16 %v884, %v882
    %v1193 = vpack.c.b16 %v887, %v885
    %v1194 = vpack.c.b16 %v888, %v886
    %v1195 = vpack.c.b16 %v891, %v889
    %v1196 = vpack.c.b16 %v892, %v890
    %v1197 = vpack.c.b16 %v895, %v893
    %v1198 = vpack.c.b16 %v896, %v894
    %v1199 = vpack.c.b16 %v899, %v897
    %v1200 = vpack.c.b16 %v900, %v898
    %v1201 = vpack.c.b16 %v903, %v901
    %v1202 = vpack.c.b16 %v904, %v902
    %v1203 = vpack.c.b16 %v907, %v905
    %v1204 = vpack.c.b16 %v908, %v906
    %v1205 = vpack.c.b16 %v911, %v909
    %v1206 = vpack.c.b16 %v912, %v910
    %v1207 = vpack.c.b16 %v915, %v913
    %v1208 = vpack.c.b16 %v916, %v914
    %v1209 = vpack.c.b16 %v919, %v917
    %v1210 = vpack.c.b16 %v920, %v918
    %v1211 = vpack.c.b16 %v923, %v921
    %v1212 = vpack.c.b16 %v924, %v922
    %v1213 = vpack.c.b16 %v927, %v925
    %v1214 = vpack.c.b16 %v928, %v926
    %v1215 = vpack.c.b16 %v931, %v929
    %v1216 = vpack.c.b16 %v932, %v930
    %v1217 = vpack.c.b16 %v935, %v933
    %v1218 = vpack.c.b16 %v936, %v934
    %v1219 = vpack.c.b16 %v939, %v937
    %v1220 = vpack.c.b16 %v940, %v938
    %v1221 = vpack.c.b16 %v943, %v941
    %v1222 = vpack.c.b16 %v944, %v942
    %v1223 = vpack.c.b16 %v947, %v945
    %v1224 = vpack.c.b16 %v948, %v946
    %v1225 = vpack.c.b16 %v951, %v949
    %v1226 = vpack.c.b16 %v952, %v950
    %v1227 = vpack.c.b16 %v955, %v953
    %v1228 = vpack.c.b16 %v956, %v954
    %v1229 = vpack.c.b16 %v959, %v957
    %v1230 = vpack.c.b16 %v960, %v958
    %v1231 = vpack.c.b16 %v963, %v961
    %v1232 = vpack.c.b16 %v964, %v962
    %v1233 = vpack.c.b16 %v967, %v965
    %v1234 = vpack.c.b16 %v968, %v966
    %v1235 = vpack.c.b16 %v971, %v969
    %v1236 = vpack.c.b16 %v972, %v970
    %v1237 = vpack.c.b16 %v975, %v973
    %v1238 = vpack.c.b16 %v976, %v974
    %v1239 = vpack.c.b16 %v979, %v977
    %v1240 = vpack.c.b16 %v980, %v978
    %v1241 = vpack.c.b16 %v983, %v981
    %v1242 = vpack.c.b16 %v984, %v982
    %v1243 = vpack.c.b16 %v987, %v985
    %v1244 = vpack.c.b16 %v988, %v986
    %v1245 = vpack.c.b16 %v991, %v989
    %v1246 = vpack.c.b16 %v992, %v990
    %v1247 = vpack.c.b16 %v995, %v993
    %v1248 = vpack.c.b16 %v996, %v994
    %v1249 = vpack.c.b16 %v999, %v997
    %v1250 = vpack.c.b16 %v1000, %v998
    %v1251 = vpack.c.b16 %v1003, %v1001
    %v1252 = vpack.c.b16 %v1004, %v1002
    %v1253 = vpack.c.b16 %v1007, %v1005
    %v1254 = vpack.c.b16 %v1008, %v1006
    %v1255 = vpack.c.b16 %v1011, %v1009
    %v1256 = vpack.c.b16 %v1012, %v1010
    %v1257 = vpack.c.b16 %v1015, %v1013
    %v1258 = vpack.c.b16 %v1016, %v1014
    %v1259 = vpack.c.b16 %v1019, %v1017
    %v1260 = vpack.c.b16 %v1020, %v1018
    %v1261 = vpack.c.b16 %v1023, %v1021
    %v1262 = vpack.c.b16 %v1024, %v1022
    %v1263 = vpack.c.b16 %v1027, %v1025
    %v1264 = vpack.c.b16 %v1028, %v1026
    %v1265 = vpack.c.b16 %v1031, %v1029
    %v1266 = vpack.c.b16 %v1032, %v1030
    %v1267 = vpack.c.b16 %v1035, %v1033
    %v1268 = vpack.c.b16 %v1036, %v1034
    %v1269 = vpack.c.b16 %v1039, %v1037
    %v1270 = vpack.c.b16 %v1040, %v1038
    %vm1499 = vcmask 359424
    %v1501 = vsel %vm1499, %v108, 0
    %vm1503 = vcmask 1045504
    %v1505 = vsel %vm1503, %v1269, 0
    %v1508 = vsel %vm1503, %v1270, 0
    %1510 = vmatprep.subr.bf16.mxu0 %v1042
    %1511 = vmatpush1.bf16.msra.mxu0 %v1041
    %1512 = vmatprep.subr.bf16.mxu0 %v1044
    %1513 = vmatpush1.bf16.msra.mxu0 %v1043
    %1514 = vmatprep.subr.bf16.mxu0 %v1046
    %1515 = vmatpush1.bf16.msra.mxu0 %v1045
    %1516 = vmatprep.subr.bf16.mxu0 %v1048
    %1517 = vmatpush1.bf16.msra.mxu0 %v1047
    %1518 = vmatprep.subr.bf16.mxu0 %v1050
    %1519 = vmatpush1.bf16.msra.mxu0 %v1049
    %1520 = vmatprep.subr.bf16.mxu0 %v1052
    %1521 = vmatpush1.bf16.msra.mxu0 %v1051
    %1522 = vmatprep.subr.bf16.mxu0 %v1054
    %1523 = vmatpush1.bf16.msra.mxu0 %v1053
    %1524 = vmatprep.subr.bf16.mxu0 %v1056
    %1525 = vmatpush1.bf16.msra.mxu0 %v1055
    %1526 = vmatprep.subr.bf16.mxu0 %v1058
    %1527 = vmatpush1.bf16.msra.mxu0 %v1057
    %1528 = vmatprep.subr.bf16.mxu0 %v1060
    %1529 = vmatpush1.bf16.msra.mxu0 %v1059
    %1530 = vmatprep.subr.bf16.mxu0 %v1062
    %1531 = vmatpush1.bf16.msra.mxu0 %v1061
    %1532 = vmatprep.subr.bf16.mxu0 %v1064
    %1533 = vmatpush1.bf16.msra.mxu0 %v1063
    %1534 = vmatprep.subr.bf16.mxu0 %v1066
    %1535 = vmatpush1.bf16.msra.mxu0 %v1065
    %1536 = vmatprep.subr.bf16.mxu0 %v1068
    %1537 = vmatpush1.bf16.msra.mxu0 %v1067
    %1538 = vmatprep.subr.bf16.mxu0 %v1070
    %1539 = vmatpush1.bf16.msra.mxu0 %v1069
    %1540 = vmatprep.subr.bf16.mxu0 %v1072
    %1541 = vmatpush1.bf16.msra.mxu0 %v1071
    %1542 = vmatprep.mubr.bf16.mxu0 %v95
    %1543 = vmatmul.mubr.bf16.gmra.mrb[0].mxu0 %v94
    %v1544 = vpop.f32.mrb[0].mxu0
    %v1545 = vadd.f32 %v344, %v1544
    %v1546 = vpop.f32.mrb[0].mxu0
    %v1547 = vadd.f32 %v348, %v1546
    %v1548 = vpop.f32.mrb[0].mxu0
    %v1549 = vpop.f32.mrb[0].mxu0
    %1550 = vdwg.mxu0
    %1551 = vmatprep.subr.bf16.mxu0 %v1074
    %1552 = vmatpush1.bf16.msra.mxu0 %v1073
    %1553 = vmatprep.subr.bf16.mxu0 %v1076
    %1554 = vmatpush1.bf16.msra.mxu0 %v1075
    %1555 = vmatprep.subr.bf16.mxu0 %v1078
    %1556 = vmatpush1.bf16.msra.mxu0 %v1077
    %1557 = vmatprep.subr.bf16.mxu0 %v1080
    %1558 = vmatpush1.bf16.msra.mxu0 %v1079
    %1559 = vmatprep.subr.bf16.mxu0 %v1082
    %1560 = vmatpush1.bf16.msra.mxu0 %v1081
    %1561 = vmatprep.subr.bf16.mxu0 %v1084
    %1562 = vmatpush1.bf16.msra.mxu0 %v1083
    %1563 = vmatprep.subr.bf16.mxu0 %v1086
    %1564 = vmatpush1.bf16.msra.mxu0 %v1085
    %1565 = vmatprep.subr.bf16.mxu0 %v1088
    %1566 = vmatpush1.bf16.msra.mxu0 %v1087
    %1567 = vmatprep.subr.bf16.mxu0 %v1090
    %1568 = vmatpush1.bf16.msra.mxu0 %v1089
    %1569 = vmatprep.subr.bf16.mxu0 %v1092
    %1570 = vmatpush1.bf16.msra.mxu0 %v1091
    %1571 = vmatprep.subr.bf16.mxu0 %v1094
    %1572 = vmatpush1.bf16.msra.mxu0 %v1093
    %1573 = vmatprep.subr.bf16.mxu0 %v1096
    %1574 = vmatpush1.bf16.msra.mxu0 %v1095
    %1575 = vmatprep.subr.bf16.mxu0 %v1098
    %1576 = vmatpush1.bf16.msra.mxu0 %v1097
    %1577 = vmatprep.subr.bf16.mxu0 %v1100
    %1578 = vmatpush1.bf16.msra.mxu0 %v1099
    %1579 = vmatprep.subr.bf16.mxu0 %v1102
    %1580 = vmatpush1.bf16.msra.mxu0 %v1101
    %1581 = vmatprep.subr.bf16.mxu0 %v1104
    %1582 = vmatpush1.bf16.msra.mxu0 %v1103
    %1583 = vmatprep.mubr.bf16.mxu0 %v97
    %1584 = vmatmul.mubr.bf16.gmra.mrb[0].mxu0 %v96
    %v1585 = vpop.f32.mrb[0].mxu0
    %v1586 = vadd.f32 %v1545, %v1585
    %v1587 = vpop.f32.mrb[0].mxu0
    %v1588 = vadd.f32 %v1547, %v1587
    %v1589 = vpop.f32.mrb[0].mxu0
    %v1590 = vpop.f32.mrb[0].mxu0
    %1591 = vdwg.mxu0
    %1592 = vmatprep.subr.bf16.mxu0 %v1106
    %1593 = vmatpush1.bf16.msra.mxu0 %v1105
    %1594 = vmatprep.subr.bf16.mxu0 %v1108
    %1595 = vmatpush1.bf16.msra.mxu0 %v1107
    %1596 = vmatprep.subr.bf16.mxu0 %v1110
    %1597 = vmatpush1.bf16.msra.mxu0 %v1109
    %1598 = vmatprep.subr.bf16.mxu0 %v1112
    %1599 = vmatpush1.bf16.msra.mxu0 %v1111
    %1600 = vmatprep.subr.bf16.mxu0 %v1114
    %1601 = vmatpush1.bf16.msra.mxu0 %v1113
    %1602 = vmatprep.subr.bf16.mxu0 %v1116
    %1603 = vmatpush1.bf16.msra.mxu0 %v1115
    %1604 = vmatprep.subr.bf16.mxu0 %v1118
    %1605 = vmatpush1.bf16.msra.mxu0 %v1117
    %1606 = vmatprep.subr.bf16.mxu0 %v1120
    %1607 = vmatpush1.bf16.msra.mxu0 %v1119
    %1608 = vmatprep.subr.bf16.mxu0 %v1122
    %1609 = vmatpush1.bf16.msra.mxu0 %v1121
    %1610 = vmatprep.subr.bf16.mxu0 %v1124
    %1611 = vmatpush1.bf16.msra.mxu0 %v1123
    %1612 = vmatprep.subr.bf16.mxu0 %v1126
    %1613 = vmatpush1.bf16.msra.mxu0 %v1125
    %1614 = vmatprep.subr.bf16.mxu0 %v1128
    %1615 = vmatpush1.bf16.msra.mxu0 %v1127
    %1616 = vmatprep.subr.bf16.mxu0 %v1130
    %1617 = vmatpush1.bf16.msra.mxu0 %v1129
    %1618 = vmatprep.subr.bf16.mxu0 %v1132
    %1619 = vmatpush1.bf16.msra.mxu0 %v1131
    %1620 = vmatprep.subr.bf16.mxu0 %v1134
    %1621 = vmatpush1.bf16.msra.mxu0 %v1133
    %1622 = vmatprep.subr.bf16.mxu0 %v1136
    %1623 = vmatpush1.bf16.msra.mxu0 %v1135
    %1624 = vmatprep.mubr.bf16.mxu0 %v99
    %1625 = vmatmul.mubr.bf16.gmra.mrb[0].mxu0 %v98
    %v1626 = vpop.f32.mrb[0].mxu0
    %v1627 = vadd.f32 %v1586, %v1626
    %v1628 = vpop.f32.mrb[0].mxu0
    %v1629 = vadd.f32 %v1588, %v1628
    %v1630 = vpop.f32.mrb[0].mxu0
    %v1631 = vpop.f32.mrb[0].mxu0
    %1632 = vdwg.mxu0
    %1633 = vmatprep.subr.bf16.mxu0 %v1138
    %1634 = vmatpush1.bf16.msra.mxu0 %v1137
    %1635 = vmatprep.subr.bf16.mxu0 %v1140
    %1636 = vmatpush1.bf16.msra.mxu0 %v1139
    %1637 = vmatprep.subr.bf16.mxu0 %v1142
    %1638 = vmatpush1.bf16.msra.mxu0 %v1141
    %1639 = vmatprep.subr.bf16.mxu0 %v1144
    %1640 = vmatpush1.bf16.msra.mxu0 %v1143
    %1641 = vmatprep.subr.bf16.mxu0 %v1146
    %1642 = vmatpush1.bf16.msra.mxu0 %v1145
    %1643 = vmatprep.subr.bf16.mxu0 %v1148
    %1644 = vmatpush1.bf16.msra.mxu0 %v1147
    %1645 = vmatprep.subr.bf16.mxu0 %v1150
    %1646 = vmatpush1.bf16.msra.mxu0 %v1149
    %1647 = vmatprep.subr.bf16.mxu0 %v1152
    %1648 = vmatpush1.bf16.msra.mxu0 %v1151
    %1649 = vmatprep.subr.bf16.mxu0 %v1154
    %1650 = vmatpush1.bf16.msra.mxu0 %v1153
    %1651 = vmatprep.subr.bf16.mxu0 %v1156
    %1652 = vmatpush1.bf16.msra.mxu0 %v1155
    %1653 = vmatprep.subr.bf16.mxu0 %v1158
    %1654 = vmatpush1.bf16.msra.mxu0 %v1157
    %1655 = vmatprep.subr.bf16.mxu0 %v1160
    %1656 = vmatpush1.bf16.msra.mxu0 %v1159
    %1657 = vmatprep.subr.bf16.mxu0 %v1162
    %1658 = vmatpush1.bf16.msra.mxu0 %v1161
    %1659 = vmatprep.subr.bf16.mxu0 %v1164
    %1660 = vmatpush1.bf16.msra.mxu0 %v1163
    %1661 = vmatprep.subr.bf16.mxu0 %v1166
    %1662 = vmatpush1.bf16.msra.mxu0 %v1165
    %1663 = vmatprep.subr.bf16.mxu0 %v1168
    %1664 = vmatpush1.bf16.msra.mxu0 %v1167
    %1665 = vmatprep.mubr.bf16.mxu0 %v101
    %1666 = vmatmul.mubr.bf16.gmra.mrb[0].mxu0 %v100
    %v1667 = vpop.f32.mrb[0].mxu0
    %v1668 = vadd.f32 %v1627, %v1667
    %v1669 = vpop.f32.mrb[0].mxu0
    %v1670 = vadd.f32 %v1629, %v1669
    %v1671 = vpop.f32.mrb[0].mxu0
    %v1672 = vpop.f32.mrb[0].mxu0
    %1673 = vdwg.mxu0
    %1674 = vmatprep.subr.bf16.mxu0 %v1170
    %1675 = vmatpush1.bf16.msra.mxu0 %v1169
    %1676 = vmatprep.subr.bf16.mxu0 %v1172
    %1677 = vmatpush1.bf16.msra.mxu0 %v1171
    %1678 = vmatprep.subr.bf16.mxu0 %v1174
    %1679 = vmatpush1.bf16.msra.mxu0 %v1173
    %1680 = vmatprep.subr.bf16.mxu0 %v1176
    %1681 = vmatpush1.bf16.msra.mxu0 %v1175
    %1682 = vmatprep.subr.bf16.mxu0 %v1178
    %1683 = vmatpush1.bf16.msra.mxu0 %v1177
    %1684 = vmatprep.subr.bf16.mxu0 %v1180
    %1685 = vmatpush1.bf16.msra.mxu0 %v1179
    %1686 = vmatprep.subr.bf16.mxu0 %v1182
    %1687 = vmatpush1.bf16.msra.mxu0 %v1181
    %1688 = vmatprep.subr.bf16.mxu0 %v1184
    %1689 = vmatpush1.bf16.msra.mxu0 %v1183
    %1690 = vmatprep.subr.bf16.mxu0 %v1186
    %1691 = vmatpush1.bf16.msra.mxu0 %v1185
    %1692 = vmatprep.subr.bf16.mxu0 %v1188
    %1693 = vmatpush1.bf16.msra.mxu0 %v1187
    %1694 = vmatprep.subr.bf16.mxu0 %v1190
    %1695 = vmatpush1.bf16.msra.mxu0 %v1189
    %1696 = vmatprep.subr.bf16.mxu0 %v1192
    %1697 = vmatpush1.bf16.msra.mxu0 %v1191
    %1698 = vmatprep.subr.bf16.mxu0 %v1194
    %1699 = vmatpush1.bf16.msra.mxu0 %v1193
    %1700 = vmatprep.subr.bf16.mxu0 %v1196
    %1701 = vmatpush1.bf16.msra.mxu0 %v1195
    %1702 = vmatprep.subr.bf16.mxu0 %v1198
    %1703 = vmatpush1.bf16.msra.mxu0 %v1197
    %1704 = vmatprep.subr.bf16.mxu0 %v1200
    %1705 = vmatpush1.bf16.msra.mxu0 %v1199
    %1706 = vmatprep.mubr.bf16.mxu0 %v103
    %1707 = vmatmul.mubr.bf16.gmra.mrb[0].mxu0 %v102
    %v1708 = vpop.f32.mrb[0].mxu0
    %v1709 = vadd.f32 %v1668, %v1708
    %v1710 = vpop.f32.mrb[0].mxu0
    %v1711 = vadd.f32 %v1670, %v1710
    %v1712 = vpop.f32.mrb[0].mxu0
    %v1713 = vpop.f32.mrb[0].mxu0
    %1714 = vdwg.mxu0
    %1715 = vmatprep.subr.bf16.mxu0 %v1202
    %1716 = vmatpush1.bf16.msra.mxu0 %v1201
    %1717 = vmatprep.subr.bf16.mxu0 %v1204
    %1718 = vmatpush1.bf16.msra.mxu0 %v1203
    %1719 = vmatprep.subr.bf16.mxu0 %v1206
    %1720 = vmatpush1.bf16.msra.mxu0 %v1205
    %1721 = vmatprep.subr.bf16.mxu0 %v1208
    %1722 = vmatpush1.bf16.msra.mxu0 %v1207
    %1723 = vmatprep.subr.bf16.mxu0 %v1210
    %1724 = vmatpush1.bf16.msra.mxu0 %v1209
    %1725 = vmatprep.subr.bf16.mxu0 %v1212
    %1726 = vmatpush1.bf16.msra.mxu0 %v1211
    %1727 = vmatprep.subr.bf16.mxu0 %v1214
    %1728 = vmatpush1.bf16.msra.mxu0 %v1213
    %1729 = vmatprep.subr.bf16.mxu0 %v1216
    %1730 = vmatpush1.bf16.msra.mxu0 %v1215
    %1731 = vmatprep.subr.bf16.mxu0 %v1218
    %1732 = vmatpush1.bf16.msra.mxu0 %v1217
    %1733 = vmatprep.subr.bf16.mxu0 %v1220
    %1734 = vmatpush1.bf16.msra.mxu0 %v1219
    %1735 = vmatprep.subr.bf16.mxu0 %v1222
    %1736 = vmatpush1.bf16.msra.mxu0 %v1221
    %1737 = vmatprep.subr.bf16.mxu0 %v1224
    %1738 = vmatpush1.bf16.msra.mxu0 %v1223
    %1739 = vmatprep.subr.bf16.mxu0 %v1226
    %1740 = vmatpush1.bf16.msra.mxu0 %v1225
    %1741 = vmatprep.subr.bf16.mxu0 %v1228
    %1742 = vmatpush1.bf16.msra.mxu0 %v1227
    %1743 = vmatprep.subr.bf16.mxu0 %v1230
    %1744 = vmatpush1.bf16.msra.mxu0 %v1229
    %1745 = vmatprep.subr.bf16.mxu0 %v1232
    %1746 = vmatpush1.bf16.msra.mxu0 %v1231
    %1747 = vmatprep.mubr.bf16.mxu0 %v105
    %1748 = vmatmul.mubr.bf16.gmra.mrb[0].mxu0 %v104
    %v1749 = vpop.f32.mrb[0].mxu0
    %v1750 = vadd.f32 %v1709, %v1749
    %v1751 = vpop.f32.mrb[0].mxu0
    %v1752 = vadd.f32 %v1711, %v1751
    %v1753 = vpop.f32.mrb[0].mxu0
    %v1754 = vpop.f32.mrb[0].mxu0
    %1755 = vdwg.mxu0
    %1756 = vmatprep.subr.bf16.mxu0 %v1234
    %1757 = vmatpush1.bf16.msra.mxu0 %v1233
    %1758 = vmatprep.subr.bf16.mxu0 %v1236
    %1759 = vmatpush1.bf16.msra.mxu0 %v1235
    %1760 = vmatprep.subr.bf16.mxu0 %v1238
    %1761 = vmatpush1.bf16.msra.mxu0 %v1237
    %1762 = vmatprep.subr.bf16.mxu0 %v1240
    %1763 = vmatpush1.bf16.msra.mxu0 %v1239
    %1764 = vmatprep.subr.bf16.mxu0 %v1242
    %1765 = vmatpush1.bf16.msra.mxu0 %v1241
    %1766 = vmatprep.subr.bf16.mxu0 %v1244
    %1767 = vmatpush1.bf16.msra.mxu0 %v1243
    %1768 = vmatprep.subr.bf16.mxu0 %v1246
    %1769 = vmatpush1.bf16.msra.mxu0 %v1245
    %1770 = vmatprep.subr.bf16.mxu0 %v1248
    %1771 = vmatpush1.bf16.msra.mxu0 %v1247
    %1772 = vmatprep.subr.bf16.mxu0 %v1250
    %1773 = vmatpush1.bf16.msra.mxu0 %v1249
    %1774 = vmatprep.subr.bf16.mxu0 %v1252
    %1775 = vmatpush1.bf16.msra.mxu0 %v1251
    %1776 = vmatprep.subr.bf16.mxu0 %v1254
    %1777 = vmatpush1.bf16.msra.mxu0 %v1253
    %1778 = vmatprep.subr.bf16.mxu0 %v1256
    %1779 = vmatpush1.bf16.msra.mxu0 %v1255
    %1780 = vmatprep.subr.bf16.mxu0 %v1258
    %1781 = vmatpush1.bf16.msra.mxu0 %v1257
    %1782 = vmatprep.subr.bf16.mxu0 %v1260
    %1783 = vmatpush1.bf16.msra.mxu0 %v1259
    %1784 = vmatprep.subr.bf16.mxu0 %v1262
    %1785 = vmatpush1.bf16.msra.mxu0 %v1261
    %1786 = vmatprep.subr.bf16.mxu0 %v1264
    %1787 = vmatpush1.bf16.msra.mxu0 %v1263
    %1788 = vmatprep.mubr.bf16.mxu0 %v107
    %1789 = vmatmul.mubr.bf16.gmra.mrb[0].mxu0 %v106
    %v1790 = vpop.f32.mrb[0].mxu0
    %v1791 = vadd.f32 %v1750, %v1790
    %v1792 = vpop.f32.mrb[0].mxu0
    %v1793 = vadd.f32 %v1752, %v1792
    %v1794 = vpop.f32.mrb[0].mxu0
    %v1795 = vpop.f32.mrb[0].mxu0
    %1796 = vdwg.mxu0
    %1797 = vmatprep.subr.bf16.mxu0 %v1266
    %1798 = vmatpush1.bf16.msra.mxu0 %v1265
    %1799 = vmatprep.subr.bf16.mxu0 %v1268
    %1800 = vmatpush1.bf16.msra.mxu0 %v1267
    %1801 = vmatprep.subr.bf16.mxu0 %v1508
    %1802 = vmatpush1.bf16.msra.mxu0 %v1505
    %1803 = vmatprep.subr.bf16.mxu0 0
    %1804 = vmatpush1.bf16.msra.mxu0 0
    %1805 = vmatprep.subr.bf16.mxu0 0
    %1806 = vmatpush1.bf16.msra.mxu0 0
    %1807 = vmatprep.subr.bf16.mxu0 0
    %1808 = vmatpush1.bf16.msra.mxu0 0
    %1809 = vmatprep.subr.bf16.mxu0 0
    %1810 = vmatpush1.bf16.msra.mxu0 0
    %1811 = vmatprep.subr.bf16.mxu0 0
    %1812 = vmatpush1.bf16.msra.mxu0 0
    %1813 = vmatprep.subr.bf16.mxu0 0
    %1814 = vmatpush1.bf16.msra.mxu0 0
    %1815 = vmatprep.subr.bf16.mxu0 0
    %1816 = vmatpush1.bf16.msra.mxu0 0
    %1817 = vmatprep.subr.bf16.mxu0 0
    %1818 = vmatpush1.bf16.msra.mxu0 0
    %1819 = vmatprep.subr.bf16.mxu0 0
    %1820 = vmatpush1.bf16.msra.mxu0 0
    %1821 = vmatprep.subr.bf16.mxu0 0
    %1822 = vmatpush1.bf16.msra.mxu0 0
    %1823 = vmatprep.subr.bf16.mxu0 0
    %1824 = vmatpush1.bf16.msra.mxu0 0
    %1825 = vmatprep.subr.bf16.mxu0 0
    %1826 = vmatpush1.bf16.msra.mxu0 0
    %1827 = vmatprep.subr.bf16.mxu0 0
    %1828 = vmatpush1.bf16.msra.mxu0 0
    %1829 = vmatprep.mubr.bf16.mxu0 0
    %1830 = vmatmul.mubr.bf16.gmra.mrb[0].mxu0 %v1501
    %v1831 = vpop.f32.mrb[0].mxu0
    %v1832 = vadd.f32 %v1791, %v1831
    %v1833 = vpop.f32.mrb[0].mxu0
    %v1834 = vadd.f32 %v1793, %v1833
    %v1835 = vpop.f32.mrb[0].mxu0
    %v1836 = vpop.f32.mrb[0].mxu0
    %1837 = vdwg.mxu0
    %v1838 = vmax.f32 %v1832, 0.0
    %v1839 = vmax.f32 %v1834, 0.0
    %v1840 = vpack.c.bf16 %v1838, %v1838
    %v1841 = vpack.c.bf16 %v1839, %v1839
    %v1842 = vld [vmem:[#allocation6] sm:$0xff]
    %v1843 = vld [vmem:[#allocation6 + $0x8] sm:$0xff]
    %v1844 = vld [vmem:[#allocation6 + $0x10] sm:$0xff]
    %v1845 = vld [vmem:[#allocation6 + $0x18] sm:$0xff]
    %v1846 = vld [vmem:[#allocation6 + $0x20] sm:$0xff]
    %v1847 = vld [vmem:[#allocation6 + $0x28] sm:$0xff]
    %v1848 = vld [vmem:[#allocation6 + $0x30] sm:$0xff]
    %v1849 = vld [vmem:[#allocation6 + $0x38] sm:$0xff]
    %v1850 = vld [vmem:[#allocation6 + $0x40] sm:$0xff]
    %v1851 = vld [vmem:[#allocation6 + $0x48] sm:$0xff]
    %v1852 = vld [vmem:[#allocation6 + $0x50] sm:$0xff]
    %v1853 = vld [vmem:[#allocation6 + $0x58] sm:$0xff]
    %v1854 = vld [vmem:[#allocation6 + $0x60] sm:$0xff]
    %v1855 = vld [vmem:[#allocation6 + $0x68] sm:$0xff]
    %v1856 = vld [vmem:[#allocation6 + $0x70] sm:$0xff]
    %v1857 = vld [vmem:[#allocation6 + $0x78] sm:$0xff]
    %v1858 = vld [vmem:[#allocation6 + $0x80] sm:$0xff]
    %v1859 = vld [vmem:[#allocation6 + $0x88] sm:$0xff]
    %v1860 = vld [vmem:[#allocation6 + $0x90] sm:$0xff]
    %v1861 = vld [vmem:[#allocation6 + $0x98] sm:$0xff]
    %v1862 = vld [vmem:[#allocation6 + $0xa0] sm:$0xff]
    %v1863 = vld [vmem:[#allocation6 + $0xa8] sm:$0xff]
    %v1864 = vld [vmem:[#allocation6 + $0xb0] sm:$0xff]
    %v1865 = vld [vmem:[#allocation6 + $0xb8] sm:$0xff]
    %v1866 = vld [vmem:[#allocation6 + $0xc0] sm:$0xff]
    %v1867 = vld [vmem:[#allocation6 + $0xc8] sm:$0xff]
    %v1868 = vld [vmem:[#allocation6 + $0xd0] sm:$0xff]
    %v1869 = vld [vmem:[#allocation6 + $0xd8] sm:$0xff]
    %v1870 = vld [vmem:[#allocation6 + $0xe0] sm:$0xff]
    %v1871 = vld [vmem:[#allocation6 + $0xe8] sm:$0xff]
    %v1872 = vld [vmem:[#allocation6 + $0xf0] sm:$0xff]
    %v1873 = vld [vmem:[#allocation6 + $0xf8] sm:$0xff]
    %v1874 = vld [vmem:[%s4] sm:$0x3]
    %v1876 = vlaneseq
    %v1877 = vshrl.u32 %v1876, 7
    %v1878 = vsub.s32 0, %v1877
    %v1879 = vrot.slane %v1874, %v1878
    %v1880 = vlaneseq
    %v1881 = vshrl.u32 %v1880, 7
    %v1882 = vsub.s32 1, %v1881
    %v1883 = vrot.slane %v1874, %v1882
    %v1918 = vunpack.c.l.b16 %v1842
    %v1919 = vunpack.c.h.b16 %v1842
    %v1920 = vunpack.c.l.b16 %v1843
    %v1921 = vunpack.c.h.b16 %v1843
    %v1922 = vunpack.c.l.b16 %v1844
    %v1923 = vunpack.c.h.b16 %v1844
    %v1924 = vunpack.c.l.b16 %v1845
    %v1925 = vunpack.c.h.b16 %v1845
    %v1926 = vunpack.c.l.b16 %v1846
    %v1927 = vunpack.c.h.b16 %v1846
    %v1928 = vunpack.c.l.b16 %v1847
    %v1929 = vunpack.c.h.b16 %v1847
    %v1930 = vunpack.c.l.b16 %v1848
    %v1931 = vunpack.c.h.b16 %v1848
    %v1932 = vunpack.c.l.b16 %v1849
    %v1933 = vunpack.c.h.b16 %v1849
    %v1934 = vunpack.c.l.b16 %v1850
    %v1935 = vunpack.c.h.b16 %v1850
    %v1936 = vunpack.c.l.b16 %v1851
    %v1937 = vunpack.c.h.b16 %v1851
    %v1938 = vunpack.c.l.b16 %v1852
    %v1939 = vunpack.c.h.b16 %v1852
    %v1940 = vunpack.c.l.b16 %v1853
    %v1941 = vunpack.c.h.b16 %v1853
    %v1942 = vunpack.c.l.b16 %v1854
    %v1943 = vunpack.c.h.b16 %v1854
    %v1944 = vunpack.c.l.b16 %v1855
    %v1945 = vunpack.c.h.b16 %v1855
    %v1946 = vunpack.c.l.b16 %v1856
    %v1947 = vunpack.c.h.b16 %v1856
    %v1948 = vunpack.c.l.b16 %v1857
    %v1949 = vunpack.c.h.b16 %v1857
    %v1950 = vunpack.c.l.b16 %v1858
    %v1951 = vunpack.c.h.b16 %v1858
    %v1952 = vunpack.c.l.b16 %v1859
    %v1953 = vunpack.c.h.b16 %v1859
    %v1954 = vunpack.c.l.b16 %v1860
    %v1955 = vunpack.c.h.b16 %v1860
    %v1956 = vunpack.c.l.b16 %v1861
    %v1957 = vunpack.c.h.b16 %v1861
    %v1958 = vunpack.c.l.b16 %v1862
    %v1959 = vunpack.c.h.b16 %v1862
    %v1960 = vunpack.c.l.b16 %v1863
    %v1961 = vunpack.c.h.b16 %v1863
    %v1962 = vunpack.c.l.b16 %v1864
    %v1963 = vunpack.c.h.b16 %v1864
    %v1964 = vunpack.c.l.b16 %v1865
    %v1965 = vunpack.c.h.b16 %v1865
    %v1966 = vunpack.c.l.b16 %v1866
    %v1967 = vunpack.c.h.b16 %v1866
    %v1968 = vunpack.c.l.b16 %v1867
    %v1969 = vunpack.c.h.b16 %v1867
    %v1970 = vunpack.c.l.b16 %v1868
    %v1971 = vunpack.c.h.b16 %v1868
    %v1972 = vunpack.c.l.b16 %v1869
    %v1973 = vunpack.c.h.b16 %v1869
    %v1974 = vunpack.c.l.b16 %v1870
    %v1975 = vunpack.c.h.b16 %v1870
    %v1976 = vunpack.c.l.b16 %v1871
    %v1977 = vunpack.c.h.b16 %v1871
    %v1978 = vunpack.c.l.b16 %v1872
    %v1979 = vunpack.c.h.b16 %v1872
    %v1980 = vunpack.c.l.b16 %v1873
    %v1981 = vunpack.c.h.b16 %v1873
    %v1982 = vpack.c.b16 %v1920, %v1918
    %v1983 = vpack.c.b16 %v1921, %v1919
    %v1984 = vpack.c.b16 %v1924, %v1922
    %v1985 = vpack.c.b16 %v1925, %v1923
    %v1986 = vpack.c.b16 %v1928, %v1926
    %v1987 = vpack.c.b16 %v1929, %v1927
    %v1988 = vpack.c.b16 %v1932, %v1930
    %v1989 = vpack.c.b16 %v1933, %v1931
    %v1990 = vpack.c.b16 %v1936, %v1934
    %v1991 = vpack.c.b16 %v1937, %v1935
    %v1992 = vpack.c.b16 %v1940, %v1938
    %v1993 = vpack.c.b16 %v1941, %v1939
    %v1994 = vpack.c.b16 %v1944, %v1942
    %v1995 = vpack.c.b16 %v1945, %v1943
    %v1996 = vpack.c.b16 %v1948, %v1946
    %v1997 = vpack.c.b16 %v1949, %v1947
    %v1998 = vpack.c.b16 %v1952, %v1950
    %v1999 = vpack.c.b16 %v1953, %v1951
    %v2000 = vpack.c.b16 %v1956, %v1954
    %v2001 = vpack.c.b16 %v1957, %v1955
    %v2002 = vpack.c.b16 %v1960, %v1958
    %v2003 = vpack.c.b16 %v1961, %v1959
    %v2004 = vpack.c.b16 %v1964, %v1962
    %v2005 = vpack.c.b16 %v1965, %v1963
    %v2006 = vpack.c.b16 %v1968, %v1966
    %v2007 = vpack.c.b16 %v1969, %v1967
    %v2008 = vpack.c.b16 %v1972, %v1970
    %v2009 = vpack.c.b16 %v1973, %v1971
    %v2010 = vpack.c.b16 %v1976, %v1974
    %v2011 = vpack.c.b16 %v1977, %v1975
    %v2012 = vpack.c.b16 %v1980, %v1978
    %v2013 = vpack.c.b16 %v1981, %v1979
    %2046 = vmatprep.subr.bf16.mxu0 %v1983
    %2047 = vmatpush1.bf16.msra.mxu0 %v1982
    %2048 = vmatprep.subr.bf16.mxu0 %v1985
    %2049 = vmatpush1.bf16.msra.mxu0 %v1984
    %2050 = vmatprep.subr.bf16.mxu0 %v1987
    %2051 = vmatpush1.bf16.msra.mxu0 %v1986
    %2052 = vmatprep.subr.bf16.mxu0 %v1989
    %2053 = vmatpush1.bf16.msra.mxu0 %v1988
    %2054 = vmatprep.subr.bf16.mxu0 %v1991
    %2055 = vmatpush1.bf16.msra.mxu0 %v1990
    %2056 = vmatprep.subr.bf16.mxu0 %v1993
    %2057 = vmatpush1.bf16.msra.mxu0 %v1992
    %2058 = vmatprep.subr.bf16.mxu0 %v1995
    %2059 = vmatpush1.bf16.msra.mxu0 %v1994
    %2060 = vmatprep.subr.bf16.mxu0 %v1997
    %2061 = vmatpush1.bf16.msra.mxu0 %v1996
    %2062 = vmatprep.subr.bf16.mxu0 %v1999
    %2063 = vmatpush1.bf16.msra.mxu0 %v1998
    %2064 = vmatprep.subr.bf16.mxu0 %v2001
    %2065 = vmatpush1.bf16.msra.mxu0 %v2000
    %2066 = vmatprep.subr.bf16.mxu0 %v2003
    %2067 = vmatpush1.bf16.msra.mxu0 %v2002
    %2068 = vmatprep.subr.bf16.mxu0 %v2005
    %2069 = vmatpush1.bf16.msra.mxu0 %v2004
    %2070 = vmatprep.subr.bf16.mxu0 %v2007
    %2071 = vmatpush1.bf16.msra.mxu0 %v2006
    %2072 = vmatprep.subr.bf16.mxu0 %v2009
    %2073 = vmatpush1.bf16.msra.mxu0 %v2008
    %2074 = vmatprep.subr.bf16.mxu0 %v2011
    %2075 = vmatpush1.bf16.msra.mxu0 %v2010
    %2076 = vmatprep.subr.bf16.mxu0 %v2013
    %2077 = vmatpush1.bf16.msra.mxu0 %v2012
    %2078 = vmatprep.mubr.bf16.mxu0 %v1841
    %2079 = vmatmul.mubr.bf16.gmra.mrb[0].mxu0 %v1840
    %v2080 = vpop.f32.mrb[0].mxu0
    %v2081 = vadd.f32 %v1879, %v2080
    %v2082 = vpop.f32.mrb[0].mxu0
    %v2083 = vadd.f32 %v1883, %v2082
    %v2084 = vpop.f32.mrb[0].mxu0
    %v2085 = vpop.f32.mrb[0].mxu0
    %2086 = vdwg.mxu0
    %v2087 = vmax.f32 %v2081, 0.0
    %v2088 = vmax.f32 %v2083, 0.0
    %v2089 = vpack.c.bf16 %v2087, %v2087
    %v2090 = vpack.c.bf16 %v2088, %v2088
    %v2091 = vld [vmem:[#allocation7] sm:$0xff]
    %v2092 = vld [vmem:[#allocation7 + $0x8] sm:$0xff]
    %v2093 = vld [vmem:[#allocation7 + $0x10] sm:$0xff]
    %v2094 = vld [vmem:[#allocation7 + $0x18] sm:$0xff]
    %v2095 = vld [vmem:[#allocation7 + $0x20] sm:$0xff]
    %v2096 = vld [vmem:[#allocation7 + $0x28] sm:$0xff]
    %v2097 = vld [vmem:[#allocation7 + $0x30] sm:$0xff]
    %v2098 = vld [vmem:[#allocation7 + $0x38] sm:$0xff]
    %v2099 = vld [vmem:[#allocation7 + $0x40] sm:$0xff]
    %v2100 = vld [vmem:[#allocation7 + $0x48] sm:$0xff]
    %v2101 = vld [vmem:[#allocation7 + $0x50] sm:$0xff]
    %v2102 = vld [vmem:[#allocation7 + $0x58] sm:$0xff]
    %v2103 = vld [vmem:[#allocation7 + $0x60] sm:$0xff]
    %v2104 = vld [vmem:[#allocation7 + $0x68] sm:$0xff]
    %v2105 = vld [vmem:[#allocation7 + $0x70] sm:$0xff]
    %v2106 = vld [vmem:[#allocation7 + $0x78] sm:$0xff]
    %v2107 = vld [vmem:[#allocation7 + $0x80] sm:$0xff]
    %v2108 = vld [vmem:[#allocation7 + $0x88] sm:$0xff]
    %v2109 = vld [vmem:[#allocation7 + $0x90] sm:$0xff]
    %v2110 = vld [vmem:[#allocation7 + $0x98] sm:$0xff]
    %v2111 = vld [vmem:[#allocation7 + $0xa0] sm:$0xff]
    %v2112 = vld [vmem:[#allocation7 + $0xa8] sm:$0xff]
    %v2113 = vld [vmem:[#allocation7 + $0xb0] sm:$0xff]
    %v2114 = vld [vmem:[#allocation7 + $0xb8] sm:$0xff]
    %v2115 = vld [vmem:[#allocation7 + $0xc0] sm:$0xff]
    %v2116 = vld [vmem:[#allocation7 + $0xc8] sm:$0xff]
    %v2117 = vld [vmem:[#allocation7 + $0xd0] sm:$0xff]
    %v2118 = vld [vmem:[#allocation7 + $0xd8] sm:$0xff]
    %v2119 = vld [vmem:[#allocation7 + $0xe0] sm:$0xff]
    %v2120 = vld [vmem:[#allocation7 + $0xe8] sm:$0xff]
    %v2121 = vld [vmem:[#allocation7 + $0xf0] sm:$0xff]
    %v2122 = vld [vmem:[#allocation7 + $0xf8] sm:$0xff]
    %v2155 = vunpack.c.l.b16 %v2091
    %v2156 = vunpack.c.h.b16 %v2091
    %v2157 = vunpack.c.l.b16 %v2092
    %v2158 = vunpack.c.h.b16 %v2092
    %v2159 = vunpack.c.l.b16 %v2093
    %v2160 = vunpack.c.h.b16 %v2093
    %v2161 = vunpack.c.l.b16 %v2094
    %v2162 = vunpack.c.h.b16 %v2094
    %v2163 = vunpack.c.l.b16 %v2095
    %v2164 = vunpack.c.h.b16 %v2095
    %v2165 = vunpack.c.l.b16 %v2096
    %v2166 = vunpack.c.h.b16 %v2096
    %v2167 = vunpack.c.l.b16 %v2097
    %v2168 = vunpack.c.h.b16 %v2097
    %v2169 = vunpack.c.l.b16 %v2098
    %v2170 = vunpack.c.h.b16 %v2098
    %v2171 = vunpack.c.l.b16 %v2099
    %v2172 = vunpack.c.h.b16 %v2099
    %v2173 = vunpack.c.l.b16 %v2100
    %v2174 = vunpack.c.h.b16 %v2100
    %v2175 = vunpack.c.l.b16 %v2101
    %v2176 = vunpack.c.h.b16 %v2101
    %v2177 = vunpack.c.l.b16 %v2102
    %v2178 = vunpack.c.h.b16 %v2102
    %v2179 = vunpack.c.l.b16 %v2103
    %v2180 = vunpack.c.h.b16 %v2103
    %v2181 = vunpack.c.l.b16 %v2104
    %v2182 = vunpack.c.h.b16 %v2104
    %v2183 = vunpack.c.l.b16 %v2105
    %v2184 = vunpack.c.h.b16 %v2105
    %v2185 = vunpack.c.l.b16 %v2106
    %v2186 = vunpack.c.h.b16 %v2106
    %v2187 = vunpack.c.l.b16 %v2107
    %v2188 = vunpack.c.h.b16 %v2107
    %v2189 = vunpack.c.l.b16 %v2108
    %v2190 = vunpack.c.h.b16 %v2108
    %v2191 = vunpack.c.l.b16 %v2109
    %v2192 = vunpack.c.h.b16 %v2109
    %v2193 = vunpack.c.l.b16 %v2110
    %v2194 = vunpack.c.h.b16 %v2110
    %v2195 = vunpack.c.l.b16 %v2111
    %v2196 = vunpack.c.h.b16 %v2111
    %v2197 = vunpack.c.l.b16 %v2112
    %v2198 = vunpack.c.h.b16 %v2112
    %v2199 = vunpack.c.l.b16 %v2113
    %v2200 = vunpack.c.h.b16 %v2113
    %v2201 = vunpack.c.l.b16 %v2114
    %v2202 = vunpack.c.h.b16 %v2114
    %v2203 = vunpack.c.l.b16 %v2115
    %v2204 = vunpack.c.h.b16 %v2115
    %v2205 = vunpack.c.l.b16 %v2116
    %v2206 = vunpack.c.h.b16 %v2116
    %v2207 = vunpack.c.l.b16 %v2117
    %v2208 = vunpack.c.h.b16 %v2117
    %v2209 = vunpack.c.l.b16 %v2118
    %v2210 = vunpack.c.h.b16 %v2118
    %v2211 = vunpack.c.l.b16 %v2119
    %v2212 = vunpack.c.h.b16 %v2119
    %v2213 = vunpack.c.l.b16 %v2120
    %v2214 = vunpack.c.h.b16 %v2120
    %v2215 = vunpack.c.l.b16 %v2121
    %v2216 = vunpack.c.h.b16 %v2121
    %v2217 = vunpack.c.l.b16 %v2122
    %v2218 = vunpack.c.h.b16 %v2122
    %v2219 = vpack.c.b16 %v2157, %v2155
    %v2220 = vpack.c.b16 %v2158, %v2156
    %v2221 = vpack.c.b16 %v2161, %v2159
    %v2222 = vpack.c.b16 %v2162, %v2160
    %v2223 = vpack.c.b16 %v2165, %v2163
    %v2224 = vpack.c.b16 %v2166, %v2164
    %v2225 = vpack.c.b16 %v2169, %v2167
    %v2226 = vpack.c.b16 %v2170, %v2168
    %v2227 = vpack.c.b16 %v2173, %v2171
    %v2228 = vpack.c.b16 %v2174, %v2172
    %v2229 = vpack.c.b16 %v2177, %v2175
    %v2230 = vpack.c.b16 %v2178, %v2176
    %v2231 = vpack.c.b16 %v2181, %v2179
    %v2232 = vpack.c.b16 %v2182, %v2180
    %v2233 = vpack.c.b16 %v2185, %v2183
    %v2234 = vpack.c.b16 %v2186, %v2184
    %v2235 = vpack.c.b16 %v2189, %v2187
    %v2236 = vpack.c.b16 %v2190, %v2188
    %v2237 = vpack.c.b16 %v2193, %v2191
    %v2238 = vpack.c.b16 %v2194, %v2192
    %v2239 = vpack.c.b16 %v2197, %v2195
    %v2240 = vpack.c.b16 %v2198, %v2196
    %v2241 = vpack.c.b16 %v2201, %v2199
    %v2242 = vpack.c.b16 %v2202, %v2200
    %v2243 = vpack.c.b16 %v2205, %v2203
    %v2244 = vpack.c.b16 %v2206, %v2204
    %v2245 = vpack.c.b16 %v2209, %v2207
    %v2246 = vpack.c.b16 %v2210, %v2208
    %v2247 = vpack.c.b16 %v2213, %v2211
    %v2248 = vpack.c.b16 %v2214, %v2212
    %v2249 = vpack.c.b16 %v2217, %v2215
    %v2250 = vpack.c.b16 %v2218, %v2216
    %2283 = vmatprep.subr.bf16.mxu0 %v2220
    %2284 = vmatpush1.bf16.msra.mxu0 %v2219
    %2285 = vmatprep.subr.bf16.mxu0 %v2222
    %2286 = vmatpush1.bf16.msra.mxu0 %v2221
    %2287 = vmatprep.subr.bf16.mxu0 %v2224
    %2288 = vmatpush1.bf16.msra.mxu0 %v2223
    %2289 = vmatprep.subr.bf16.mxu0 %v2226
    %2290 = vmatpush1.bf16.msra.mxu0 %v2225
    %2291 = vmatprep.subr.bf16.mxu0 %v2228
    %2292 = vmatpush1.bf16.msra.mxu0 %v2227
    %2293 = vmatprep.subr.bf16.mxu0 %v2230
    %2294 = vmatpush1.bf16.msra.mxu0 %v2229
    %2295 = vmatprep.subr.bf16.mxu0 %v2232
    %2296 = vmatpush1.bf16.msra.mxu0 %v2231
    %2297 = vmatprep.subr.bf16.mxu0 %v2234
    %2298 = vmatpush1.bf16.msra.mxu0 %v2233
    %2299 = vmatprep.subr.bf16.mxu0 %v2236
    %2300 = vmatpush1.bf16.msra.mxu0 %v2235
    %2301 = vmatprep.subr.bf16.mxu0 %v2238
    %2302 = vmatpush1.bf16.msra.mxu0 %v2237
    %2303 = vmatprep.subr.bf16.mxu0 %v2240
    %2304 = vmatpush1.bf16.msra.mxu0 %v2239
    %2305 = vmatprep.subr.bf16.mxu0 %v2242
    %2306 = vmatpush1.bf16.msra.mxu0 %v2241
    %2307 = vmatprep.subr.bf16.mxu0 %v2244
    %2308 = vmatpush1.bf16.msra.mxu0 %v2243
    %2309 = vmatprep.subr.bf16.mxu0 %v2246
    %2310 = vmatpush1.bf16.msra.mxu0 %v2245
    %2311 = vmatprep.subr.bf16.mxu0 %v2248
    %2312 = vmatpush1.bf16.msra.mxu0 %v2247
    %2313 = vmatprep.subr.bf16.mxu0 %v2250
    %2314 = vmatpush1.bf16.msra.mxu0 %v2249
    %2315 = vmatprep.mubr.bf16.mxu0 %v2090
    %2316 = vmatmul.mubr.bf16.gmra.mrb[0].mxu0 %v2089
    %v2317 = vpop.f32.mrb[0].mxu0
    %v2318 = vadd.f32 0.0, %v2317
    %v2319 = vpop.f32.mrb[0].mxu0
    %v2320 = vadd.f32 0.0, %v2319
    %v2321 = vpop.f32.mrb[0].mxu0
    %v2322 = vpop.f32.mrb[0].mxu0
    %2323 = vdwg.mxu0
    %v2324 = vpack.c.bf16 %v2318, %v2318
    %v2325 = vpack.c.bf16 %v2320, %v2320
    %v2328 = vunpack.c.l.b16 %v2324
    %v2329 = vunpack.c.l.b16 %v2325
    %v2330 = vpack.c.b16 %v2329, %v2328
    %2332 = vst [vmem:[%s7] sm:$0xff] %v2330
    %v2333 = vmul.f32 %v2318, 0.5
    %v2334 = vmul.f32 %v2320, 0.5
    %v2335 = vtanh.pop %v2333
    %v2336 = vtanh.pop %v2334
    %v2337 = vmul.f32 %v2335, 0.5
    %v2338 = vmul.f32 %v2336, 0.5
    %v2339 = vadd.f32 %v2337, 0.5
    %v2340 = vadd.f32 %v2338, 0.5
    %v2341 = vpack.c.bf16 %v2339, %v2339
    %v2342 = vpack.c.bf16 %v2340, %v2340
    %v2345 = vunpack.c.l.b16 %v2341
    %v2346 = vunpack.c.l.b16 %v2342
    %v2347 = vpack.c.b16 %v2346, %v2345
    %2349 = vst [vmem:[%s6] sm:$0xff] %v2347
    // Predicated region
    $region42: #{infnet_forward.1} parent=1 // pred_check
      _
    $region43: #{infnet_forward.1} parent=1 // pred_check_branch
      %2351 = sbr.rel (0) target = $region45
    $region44: #{infnet_forward.1} parent=1 // pred_region
      _
    $region45: #{infnet_forward.1} parent=1 // pred_fallthru
      _
    // Predicated region
    $region46: #{infnet_forward.1} parent=1 // pred_check
      _
    $region47: #{infnet_forward.1} parent=1 // pred_check_branch
      %2353 = sbr.rel (0) target = $region49
    $region48: #{infnet_forward.1} parent=1 // pred_region
      _
    $region49: #{infnet_forward.1} parent=1 // pred_fallthru
      _
    // Predicated region
    $region50: #{infnet_forward.1} parent=1 // pred_check
      _
    $region51: #{infnet_forward.1} parent=1 // pred_check_branch
      %2355 = sbr.rel (0) target = $region53
    $region52: #{infnet_forward.1} parent=1 // pred_region
      _
    $region53: #{infnet_forward.1} parent=1 // pred_fallthru
      _
    // Predicated region
    $region54: #{infnet_forward.1} parent=1 // pred_check
      _
    $region55: #{infnet_forward.1} parent=1 // pred_check_branch
      %2357 = sbr.rel (0) target = $region57
    $region56: #{infnet_forward.1} parent=1 // pred_region
      _
    $region57: #{infnet_forward.1} parent=1 // pred_fallthru
      _
    %2358 = vsyncpa [#allocation3], 1
    %2359 = vsyncpa [#allocation5], 1
    %2360 = vsyncpa [#allocation8], 1

</llo_original>
